<compile_context>
chip_gen: v5e
topology: v5e:2x2
jax: 0.10.0
libtpu: 0.0.40
codegen_flags: <defaults>
</compile_context>

<pallas_src>
import functools

import jax
import jax.numpy as jnp
import numpy as np
from jax.experimental import pallas as pl
from jax.experimental.pallas import tpu as pltpu

EPS = 1e-5          # BatchNorm2d default eps
LEAKY_SLOPE = 0.2   # LeakyReLU negative slope


def _round_up(x, m):
    return (x + m - 1) // m * m


# ----------------------------- Pallas kernels ------------------------------


def _conv_stats_kernel(xs_ref, w_ref, y_ref, stats_ref, *, n_rows, ow1, oh, ow):
    """Strided conv for one batch element + per-channel BN sum / sum-of-squares.

    xs_ref:   [1, Lpad, 4*Cin] bf16  space-to-depth input, rows flattened over
                                     the (OH+1, OW+1) halo grid.
    w_ref:    [4, 4*Cin, Cpad] bf16  one weight matrix per (dR, dC) tap.
    y_ref:    [1, L, Cpad]     bf16  conv output on the halo grid (garbage on
                                     the halo row/col, cropped later).
    stats_ref:[1, 2, Cpad]     f32   row 0: sum, row 1: sum of squares, over
                                     valid positions only.
    """
    acc = jnp.zeros((n_rows, w_ref.shape[-1]), jnp.float32)
    for t in range(4):                      # taps (dR, dC) in {0,1}^2
        off = (t // 2) * ow1 + (t % 2)      # uniform shift in flattened rows
        a = xs_ref[0, pl.ds(off, n_rows), :]                    # [L, 4*Cin] bf16
        acc = acc + jnp.dot(a, w_ref[t], preferred_element_type=jnp.float32)
    y_ref[0] = acc.astype(y_ref.dtype)

    # BatchNorm statistics: only rows with r < OH and c < OW are real outputs.
    idx = jax.lax.broadcasted_iota(jnp.int32, (n_rows, 1), 0)
    valid = (idx % ow1 < ow) & (idx < oh * ow1)
    masked = jnp.where(valid, acc, 0.0)
    stats_ref[0, 0:1, :] = jnp.sum(masked, axis=0, keepdims=True)
    stats_ref[0, 1:2, :] = jnp.sum(masked * masked, axis=0, keepdims=True)


def _bn_act_kernel(y_ref, scale_ref, shift_ref, o_ref, *, slope):
    """Apply per-channel affine (folded BN) + LeakyReLU to one batch block."""
    y = y_ref[0].astype(jnp.float32)                  # [L, Cpad]
    z = y * scale_ref[...] + shift_ref[...]           # [1, Cpad] broadcasts
    o_ref[0] = jnp.where(z > 0, z, slope * z)


# ------------------------------- wrapper ------------------------------------


@functools.partial(jax.jit, static_argnames=("batchnorm", "activation"))
def downsample_conv_forward(x, weight, gamma, beta, *, batchnorm=True,
                            activation=True):
    """x: [N, Cin, H, W]; weight: [Cout, Cin, 4, 4] (PyTorch Conv2d layout)."""
    n, cin, h, w = x.shape
    cout = weight.shape[0]
    k, s, p = 4, 2, 1
    assert h % 2 == 0 and w % 2 == 0, "k=4, s=2, p=1 downsample assumes even H, W"
    oh = (h + 2 * p - k) // s + 1                    # = H // 2
    ow = (w + 2 * p - k) // s + 1                    # = W // 2
    ow1 = ow + 1
    L = (oh + 1) * ow1                               # halo grid, flattened
    lpad = _round_up(L + ow1 + 1, 8)                 # room for max tap shift
    cpad = _round_up(cout, 128)                      # lane-dense output width

    # ---- cheap XLA prep: O(input) bytes, no im2col blow-up in HBM ----------
    xh = jnp.transpose(x.astype(jnp.bfloat16), (0, 2, 3, 1))        # NHWC bf16
    xp = jnp.pad(xh, ((0, 0), (p, p), (p, p), (0, 0)))              # [N,H+2,W+2,Cin]
    # space-to-depth 2x2: 4x4/s2 conv  ==  2x2/s1 conv over 4*Cin channels
    xs = xp.reshape(n, oh + 1, 2, ow1, 2, cin).transpose(0, 1, 3, 2, 4, 5)
    xs = xs.reshape(n, L, 4 * cin)
    xs = jnp.pad(xs, ((0, 0), (0, lpad - L), (0, 0)))

    # weight -> per-tap matrices [(dR,dC), (sh,sw,ci), co], padded to Cpad lanes
    w6 = weight.reshape(cout, cin, 2, 2, 2, 2)       # (co, ci, dR, sh, dC, sw)
    wt = jnp.transpose(w6, (2, 4, 3, 5, 1, 0)).reshape(4, 4 * cin, cout)
    wt = jnp.pad(wt, ((0, 0), (0, 0), (0, cpad - cout))).astype(jnp.bfloat16)

    # ---- pass 1: conv + fused per-channel sum / sumsq ------------------------
    yconv, stats = pl.pallas_call(
        functools.partial(_conv_stats_kernel, n_rows=L, ow1=ow1, oh=oh, ow=ow),
        out_shape=(jax.ShapeDtypeStruct((n, L, cpad), jnp.bfloat16),
                   jax.ShapeDtypeStruct((n, 2, cpad), jnp.float32)),
        grid_spec=pltpu.PrefetchScalarGridSpec(
            num_scalar_prefetch=0,
            grid=(n,),
            in_specs=[pl.BlockSpec((1, lpad, 4 * cin), lambda i: (i, 0, 0)),
                      pl.BlockSpec((4, 4 * cin, cpad), lambda i: (0, 0, 0))],
            out_specs=(pl.BlockSpec((1, L, cpad), lambda i: (i, 0, 0)),
                       pl.BlockSpec((1, 2, cpad), lambda i: (i, 0, 0)))),
        compiler_params=pltpu.CompilerParams(
            dimension_semantics=("parallel",)),
    )(xs, wt)

    # ---- tiny (Cpad-length) stats -> folded scale / shift --------------------
    if batchnorm:
        tot = jnp.sum(stats, axis=0)                                 # [2, Cpad]
        cnt = jnp.float32(n * oh * ow)
        mean = tot[0] / cnt
        var = jnp.maximum(tot[1] / cnt - mean * mean, 0.0)           # biased var
        g = jnp.pad(gamma.astype(jnp.float32), (0, cpad - cout))
        b = jnp.pad(beta.astype(jnp.float32), (0, cpad - cout))
        scale = g * jax.lax.rsqrt(var + EPS)
        shift = b - mean * scale
    else:
        scale = jnp.ones((cpad,), jnp.float32)
        shift = jnp.zeros((cpad,), jnp.float32)
    slope = LEAKY_SLOPE if activation else 1.0

    # ---- pass 2: normalize + LeakyReLU, tiled per batch element --------------
    out = pl.pallas_call(
        functools.partial(_bn_act_kernel, slope=slope),
        out_shape=jax.ShapeDtypeStruct((n, L, cpad), jnp.float32),
        grid_spec=pltpu.PrefetchScalarGridSpec(
            num_scalar_prefetch=0,
            grid=(n,),
            in_specs=[pl.BlockSpec((1, L, cpad), lambda i: (i, 0, 0)),
                      pl.BlockSpec((1, cpad), lambda i: (0, 0)),
                      pl.BlockSpec((1, cpad), lambda i: (0, 0))],
            out_specs=pl.BlockSpec((1, L, cpad), lambda i: (i, 0, 0))),
        compiler_params=pltpu.CompilerParams(
            dimension_semantics=("parallel",)),
    )(yconv, scale.reshape(1, cpad), shift.reshape(1, cpad))

    # crop halo row/col + channel padding, return NCHW (single cheap XLA pass;
    # an NHWC consumer could take `out` directly and skip this transpose).
    y = out.reshape(n, oh + 1, ow1, cpad)[:, :oh, :ow, :cout]
    return jnp.transpose(y, (0, 3, 1, 2))


# ------------------------------ reference -----------------------------------


def _reference(x, weight, gamma, beta):
    # Inputs rounded to bf16 to match the kernel's operand precision.
    xr = x.astype(jnp.bfloat16).astype(jnp.float32)
    wr = weight.astype(jnp.bfloat16).astype(jnp.float32)
    conv = jax.lax.conv_general_dilated(
        xr, wr, window_strides=(2, 2), padding=[(1, 1), (1, 1)],
        dimension_numbers=("NCHW", "OIHW", "NCHW"))
    mean = conv.mean(axis=(0, 2, 3), keepdims=True)
    var = jnp.square(conv - mean).mean(axis=(0, 2, 3), keepdims=True)
    y = ((conv - mean) * jax.lax.rsqrt(var + EPS)
         * gamma.reshape(1, -1, 1, 1) + beta.reshape(1, -1, 1, 1))
    return jnp.where(y > 0, y, LEAKY_SLOPE * y)


if __name__ == "__main__":
    key = jax.random.PRNGKey(0)
    k_x, k_w, k_g, k_b = jax.random.split(key, 4)

    N, C_IN, C_OUT, H, W = 2, 4, 8, 16, 16
    x = jax.random.normal(k_x, (N, C_IN, H, W), jnp.float32)
    # Conv2d weight layout: [out_channels, in_channels, kH, kW]
    weight = 0.1 * jax.random.normal(k_w, (C_OUT, C_IN, 4, 4), jnp.float32)
    gamma = 1.0 + 0.1 * jax.random.normal(k_g, (C_OUT,), jnp.float32)
    beta = 0.1 * jax.random.normal(k_b, (C_OUT,), jnp.float32)

    out = jax.block_until_ready(downsample_conv_forward(x, weight, gamma, beta))
    assert out.shape == (N, C_OUT, H // 2, W // 2), out.shape

    ref = jax.block_until_ready(_reference(x, weight, gamma, beta))
    np.testing.assert_allclose(np.asarray(out), np.asarray(ref),
                               atol=2e-2, rtol=2e-2)

    print("KERNEL_OK")
</pallas_src>

<mosaic_0001>
module attributes {stable_mosaic.version = 11 : i64} {
  func.func @_bn_act_kernel(%arg0: i32, %arg1: memref<1x81x128xbf16, #tpu.memory_space<vmem>>, %arg2: memref<1x128xf32, #tpu.memory_space<vmem>>, %arg3: memref<1x128xf32, #tpu.memory_space<vmem>>, %arg4: memref<1x81x128xf32, #tpu.memory_space<vmem>>) attributes {dimension_semantics = [#tpu.dimension_semantics<parallel>], iteration_bounds = array<i64: 2>, scalar_prefetch = 0 : i64, scratch_operands = 0 : i64, tpu.core_type = #tpu.core_type<tc>, window_params = [{transform_indices = @transform_0, window_bounds = array<i64: 1, 81, 128>}, {pipeline_mode = #tpu.pipeline_mode<synchronous>, transform_indices = @transform_1, window_bounds = array<i64: 1, 128>}, {pipeline_mode = #tpu.pipeline_mode<synchronous>, transform_indices = @transform_2, window_bounds = array<i64: 1, 128>}, {transform_indices = @transform_3, window_bounds = array<i64: 1, 81, 128>}]} {
    %c0 = arith.constant 0 : index
    %c0_0 = arith.constant 0 : index
    %c0_1 = arith.constant 0 : index
    %0 = vector.load %arg1[%c0, %c0_0, %c0_1] : memref<1x81x128xbf16, #tpu.memory_space<vmem>>, vector<1x81x128xbf16>
    %1 = vector.shape_cast %0 : vector<1x81x128xbf16> to vector<81x128xbf16>
    %2 = arith.extf %1 : vector<81x128xbf16> to vector<81x128xf32>
    %c0_2 = arith.constant 0 : index
    %c0_3 = arith.constant 0 : index
    %3 = vector.load %arg2[%c0_2, %c0_3] : memref<1x128xf32, #tpu.memory_space<vmem>>, vector<1x128xf32>
    %4 = vector.broadcast %3 : vector<1x128xf32> to vector<81x128xf32>
    %5 = arith.mulf %2, %4 : vector<81x128xf32>
    %c0_4 = arith.constant 0 : index
    %c0_5 = arith.constant 0 : index
    %6 = vector.load %arg3[%c0_4, %c0_5] : memref<1x128xf32, #tpu.memory_space<vmem>>, vector<1x128xf32>
    %7 = vector.broadcast %6 : vector<1x128xf32> to vector<81x128xf32>
    %8 = arith.addf %5, %7 : vector<81x128xf32>
    %cst = arith.constant 0.000000e+00 : f32
    %9 = vector.broadcast %cst : f32 to vector<81x128xf32>
    %10 = arith.cmpf ogt, %8, %9 : vector<81x128xf32>
    %cst_6 = arith.constant 2.000000e-01 : f32
    %11 = vector.broadcast %cst_6 : f32 to vector<81x128xf32>
    %12 = arith.mulf %11, %8 : vector<81x128xf32>
    %13 = arith.select %10, %8, %12 : vector<81x128xi1>, vector<81x128xf32>
    %c0_7 = arith.constant 0 : index
    %c0_8 = arith.constant 0 : index
    %c0_9 = arith.constant 0 : index
    %14 = vector.load %arg4[%c0_7, %c0_8, %c0_9] : memref<1x81x128xf32, #tpu.memory_space<vmem>>, vector<1x81x128xf32>
    %15 = vector.shape_cast %14 : vector<1x81x128xf32> to vector<81x128xf32>
    %16 = vector.shape_cast %13 : vector<81x128xf32> to vector<1x81x128xf32>
    tpu.vector_store %arg4[%c0_7, %c0_8, %c0_9], %16 {strides = array<i32>} : memref<1x81x128xf32, #tpu.memory_space<vmem>>, vector<1x81x128xf32>,
    return
  }
  func.func @transform_0(%arg0: i32) -> (i32, i32, i32) {
    %c0_i32 = arith.constant 0 : i32
    %c0_i32_0 = arith.constant 0 : i32
    %c0_i32_1 = arith.constant 0 : i32
    return %arg0, %c0_i32, %c0_i32_0 : i32, i32, i32
  }
  func.func @transform_1(%arg0: i32) -> (i32, i32) {
    %c0_i32 = arith.constant 0 : i32
    %c0_i32_0 = arith.constant 0 : i32
    %c0_i32_1 = arith.constant 0 : i32
    return %c0_i32, %c0_i32_0 : i32, i32
  }
  func.func @transform_2(%arg0: i32) -> (i32, i32) {
    %c0_i32 = arith.constant 0 : i32
    %c0_i32_0 = arith.constant 0 : i32
    %c0_i32_1 = arith.constant 0 : i32
    return %c0_i32, %c0_i32_0 : i32, i32
  }
  func.func @transform_3(%arg0: i32) -> (i32, i32, i32) {
    %c0_i32 = arith.constant 0 : i32
    %c0_i32_0 = arith.constant 0 : i32
    %c0_i32_1 = arith.constant 0 : i32
    return %arg0, %c0_i32, %c0_i32_0 : i32, i32, i32
  }
}

module attributes {stable_mosaic.version = 11 : i64} {
  func.func @_conv_stats_kernel(%arg0: i32, %arg1: memref<1x96x16xbf16, #tpu.memory_space<vmem>>, %arg2: memref<4x16x128xbf16, #tpu.memory_space<vmem>>, %arg3: memref<1x81x128xbf16, #tpu.memory_space<vmem>>, %arg4: memref<1x2x128xf32, #tpu.memory_space<vmem>>) attributes {dimension_semantics = [#tpu.dimension_semantics<parallel>], iteration_bounds = array<i64: 2>, scalar_prefetch = 0 : i64, scratch_operands = 0 : i64, tpu.core_type = #tpu.core_type<tc>, window_params = [{transform_indices = @transform_0, window_bounds = array<i64: 1, 96, 16>}, {pipeline_mode = #tpu.pipeline_mode<synchronous>, transform_indices = @transform_1, window_bounds = array<i64: 4, 16, 128>}, {transform_indices = @transform_2, window_bounds = array<i64: 1, 81, 128>}, {transform_indices = @transform_3, window_bounds = array<i64: 1, 2, 128>}]} {
    %cst = arith.constant 0.000000e+00 : f32
    %0 = vector.broadcast %cst : f32 to vector<81x128xf32>
    %c0 = arith.constant 0 : index
    %c0_0 = arith.constant 0 : index
    %c0_1 = arith.constant 0 : index
    %1 = vector.load %arg1[%c0, %c0_0, %c0_1] : memref<1x96x16xbf16, #tpu.memory_space<vmem>>, vector<1x81x16xbf16>
    %2 = vector.shape_cast %1 : vector<1x81x16xbf16> to vector<81x16xbf16>
    %c0_2 = arith.constant 0 : index
    %c0_3 = arith.constant 0 : index
    %c0_4 = arith.constant 0 : index
    %3 = vector.load %arg2[%c0_2, %c0_3, %c0_4] : memref<4x16x128xbf16, #tpu.memory_space<vmem>>, vector<1x16x128xbf16>
    %4 = vector.shape_cast %3 : vector<1x16x128xbf16> to vector<16x128xbf16>
    %cst_5 = arith.constant dense<0.000000e+00> : vector<81x128xf32>
    %5 = tpu.matmul %2, %4, %cst_5 {dimension_numbers = #tpu.dot_dimension_numbers<[1], [0], [0], [1], [0, 0, 1, 1], [], []>} : vector<81x16xbf16>, vector<16x128xbf16>, vector<81x128xf32> -> vector<81x128xf32>
    %6 = arith.addf %0, %5 : vector<81x128xf32>
    %c0_6 = arith.constant 0 : index
    %c1 = arith.constant 1 : index
    %c0_7 = arith.constant 0 : index
    %7 = vector.load %arg1[%c0_6, %c1, %c0_7] : memref<1x96x16xbf16, #tpu.memory_space<vmem>>, vector<1x81x16xbf16>
    %8 = vector.shape_cast %7 : vector<1x81x16xbf16> to vector<81x16xbf16>
    %c1_8 = arith.constant 1 : index
    %c0_9 = arith.constant 0 : index
    %c0_10 = arith.constant 0 : index
    %9 = vector.load %arg2[%c1_8, %c0_9, %c0_10] : memref<4x16x128xbf16, #tpu.memory_space<vmem>>, vector<1x16x128xbf16>
    %10 = vector.shape_cast %9 : vector<1x16x128xbf16> to vector<16x128xbf16>
    %cst_11 = arith.constant dense<0.000000e+00> : vector<81x128xf32>
    %11 = tpu.matmul %8, %10, %cst_11 {dimension_numbers = #tpu.dot_dimension_numbers<[1], [0], [0], [1], [0, 0, 1, 1], [], []>} : vector<81x16xbf16>, vector<16x128xbf16>, vector<81x128xf32> -> vector<81x128xf32>
    %12 = arith.addf %6, %11 : vector<81x128xf32>
    %c0_12 = arith.constant 0 : index
    %c9 = arith.constant 9 : index
    %c0_13 = arith.constant 0 : index
    %13 = vector.load %arg1[%c0_12, %c9, %c0_13] : memref<1x96x16xbf16, #tpu.memory_space<vmem>>, vector<1x81x16xbf16>
    %14 = vector.shape_cast %13 : vector<1x81x16xbf16> to vector<81x16xbf16>
    %c2 = arith.constant 2 : index
    %c0_14 = arith.constant 0 : index
    %c0_15 = arith.constant 0 : index
    %15 = vector.load %arg2[%c2, %c0_14, %c0_15] : memref<4x16x128xbf16, #tpu.memory_space<vmem>>, vector<1x16x128xbf16>
    %16 = vector.shape_cast %15 : vector<1x16x128xbf16> to vector<16x128xbf16>
    %cst_16 = arith.constant dense<0.000000e+00> : vector<81x128xf32>
    %17 = tpu.matmul %14, %16, %cst_16 {dimension_numbers = #tpu.dot_dimension_numbers<[1], [0], [0], [1], [0, 0, 1, 1], [], []>} : vector<81x16xbf16>, vector<16x128xbf16>, vector<81x128xf32> -> vector<81x128xf32>
    %18 = arith.addf %12, %17 : vector<81x128xf32>
    %c0_17 = arith.constant 0 : index
    %c10 = arith.constant 10 : index
    %c0_18 = arith.constant 0 : index
    %19 = vector.load %arg1[%c0_17, %c10, %c0_18] : memref<1x96x16xbf16, #tpu.memory_space<vmem>>, vector<1x81x16xbf16>
    %20 = vector.shape_cast %19 : vector<1x81x16xbf16> to vector<81x16xbf16>
    %c3 = arith.constant 3 : index
    %c0_19 = arith.constant 0 : index
    %c0_20 = arith.constant 0 : index
    %21 = vector.load %arg2[%c3, %c0_19, %c0_20] : memref<4x16x128xbf16, #tpu.memory_space<vmem>>, vector<1x16x128xbf16>
    %22 = vector.shape_cast %21 : vector<1x16x128xbf16> to vector<16x128xbf16>
    %cst_21 = arith.constant dense<0.000000e+00> : vector<81x128xf32>
    %23 = tpu.matmul %20, %22, %cst_21 {dimension_numbers = #tpu.dot_dimension_numbers<[1], [0], [0], [1], [0, 0, 1, 1], [], []>} : vector<81x16xbf16>, vector<16x128xbf16>, vector<81x128xf32> -> vector<81x128xf32>
    %24 = arith.addf %18, %23 : vector<81x128xf32>
    %25 = arith.truncf %24 : vector<81x128xf32> to vector<81x128xbf16>
    %c0_22 = arith.constant 0 : index
    %c0_23 = arith.constant 0 : index
    %c0_24 = arith.constant 0 : index
    %26 = vector.load %arg3[%c0_22, %c0_23, %c0_24] : memref<1x81x128xbf16, #tpu.memory_space<vmem>>, vector<1x81x128xbf16>
    %27 = vector.shape_cast %26 : vector<1x81x128xbf16> to vector<81x128xbf16>
    %28 = vector.shape_cast %25 : vector<81x128xbf16> to vector<1x81x128xbf16>
    tpu.vector_store %arg3[%c0_22, %c0_23, %c0_24], %28 {strides = array<i32>} : memref<1x81x128xbf16, #tpu.memory_space<vmem>>, vector<1x81x128xbf16>,
    %29 = tpu.iota {dimensions = array<i32: 0>} : vector<81x1xi32>
    %c9_i32 = arith.constant 9 : i32
    %c0_i32 = arith.constant 0 : i32
    %30 = arith.cmpi eq, %c9_i32, %c0_i32 : i32
    %c1_i32 = arith.constant 1 : i32
    %31 = arith.select %30, %c1_i32, %c9_i32 : i32
    %32 = vector.broadcast %31 : i32 to vector<81x1xi32>
    %33 = arith.remsi %29, %32 : vector<81x1xi32>
    %c0_i32_25 = arith.constant 0 : i32
    %34 = vector.broadcast %c0_i32_25 : i32 to vector<81x1xi32>
    %35 = arith.cmpi ne, %33, %34 : vector<81x1xi32>
    %c0_i32_26 = arith.constant 0 : i32
    %36 = vector.broadcast %c0_i32_26 : i32 to vector<81x1xi32>
    %37 = arith.cmpi slt, %33, %36 : vector<81x1xi32>
    %c0_i32_27 = arith.constant 0 : i32
    %38 = arith.cmpi slt, %31, %c0_i32_27 : i32
    %39 = vector.broadcast %38 : i1 to vector<81x1xi1>
    %40 = vector.broadcast %39 : vector<81x1xi1> to vector<81x1xi1>
    %41 = arith.xori %37, %40 : vector<81x1xi1>
    %42 = arith.andi %41, %35 : vector<81x1xi1>
    %43 = vector.broadcast %31 : i32 to vector<81x1xi32>
    %44 = arith.addi %33, %43 : vector<81x1xi32>
    %45 = arith.select %42, %44, %33 : vector<81x1xi1>, vector<81x1xi32>
    %c8_i32 = arith.constant 8 : i32
    %46 = vector.broadcast %c8_i32 : i32 to vector<81x1xi32>
    %47 = arith.cmpi slt, %45, %46 : vector<81x1xi32>
    %c72_i32 = arith.constant 72 : i32
    %48 = vector.broadcast %c72_i32 : i32 to vector<81x1xi32>
    %49 = arith.cmpi slt, %29, %48 : vector<81x1xi32>
    %50 = arith.andi %47, %49 : vector<81x1xi1>
    %cst_28 = arith.constant 0.000000e+00 : f32
    %51 = vector.shape_cast %50 : vector<81x1xi1> to vector<81x1xi1>
    %52 = vector.broadcast %51 : vector<81x1xi1> to vector<81x128xi1>
    %53 = vector.broadcast %cst_28 : f32 to vector<81x128xf32>
    %54 = arith.select %52, %24, %53 : vector<81x128xi1>, vector<81x128xf32>
    %cst_29 = arith.constant dense<0.000000e+00> : vector<128xf32>
    %55 = vector.multi_reduction <add>, %54, %cst_29 [0] : vector<81x128xf32> to vector<128xf32>
    %56 = vector.shape_cast %55 : vector<128xf32> to vector<1x128xf32>
    %c0_30 = arith.constant 0 : index
    %c0_31 = arith.constant 0 : index
    %c0_32 = arith.constant 0 : index
    %57 = vector.load %arg4[%c0_30, %c0_31, %c0_32] : memref<1x2x128xf32, #tpu.memory_space<vmem>>, vector<1x1x128xf32>
    %58 = vector.shape_cast %57 : vector<1x1x128xf32> to vector<1x128xf32>
    %59 = vector.shape_cast %56 : vector<1x128xf32> to vector<1x1x128xf32>
    tpu.vector_store %arg4[%c0_30, %c0_31, %c0_32], %59 {strides = array<i32>} : memref<1x2x128xf32, #tpu.memory_space<vmem>>, vector<1x1x128xf32>,
    %60 = arith.mulf %54, %54 : vector<81x128xf32>
    %cst_33 = arith.constant dense<0.000000e+00> : vector<128xf32>
    %61 = vector.multi_reduction <add>, %60, %cst_33 [0] : vector<81x128xf32> to vector<128xf32>
    %62 = vector.shape_cast %61 : vector<128xf32> to vector<1x128xf32>
    %c0_34 = arith.constant 0 : index
    %c1_35 = arith.constant 1 : index
    %c0_36 = arith.constant 0 : index
    %63 = vector.load %arg4[%c0_34, %c1_35, %c0_36] : memref<1x2x128xf32, #tpu.memory_space<vmem>>, vector<1x1x128xf32>
    %64 = vector.shape_cast %63 : vector<1x1x128xf32> to vector<1x128xf32>
    %65 = vector.shape_cast %62 : vector<1x128xf32> to vector<1x1x128xf32>
    tpu.vector_store %arg4[%c0_34, %c1_35, %c0_36], %65 {strides = array<i32>} : memref<1x2x128xf32, #tpu.memory_space<vmem>>, vector<1x1x128xf32>,
    return
  }
  func.func @transform_0(%arg0: i32) -> (i32, i32, i32) {
    %c0_i32 = arith.constant 0 : i32
    %c0_i32_0 = arith.constant 0 : i32
    %c0_i32_1 = arith.constant 0 : i32
    return %arg0, %c0_i32, %c0_i32_0 : i32, i32, i32
  }
  func.func @transform_1(%arg0: i32) -> (i32, i32, i32) {
    %c0_i32 = arith.constant 0 : i32
    %c0_i32_0 = arith.constant 0 : i32
    %c0_i32_1 = arith.constant 0 : i32
    %c0_i32_2 = arith.constant 0 : i32
    return %c0_i32, %c0_i32_0, %c0_i32_1 : i32, i32, i32
  }
  func.func @transform_2(%arg0: i32) -> (i32, i32, i32) {
    %c0_i32 = arith.constant 0 : i32
    %c0_i32_0 = arith.constant 0 : i32
    %c0_i32_1 = arith.constant 0 : i32
    return %arg0, %c0_i32, %c0_i32_0 : i32, i32, i32
  }
  func.func @transform_3(%arg0: i32) -> (i32, i32, i32) {
    %c0_i32 = arith.constant 0 : i32
    %c0_i32_0 = arith.constant 0 : i32
    %c0_i32_1 = arith.constant 0 : i32
    return %arg0, %c0_i32, %c0_i32_0 : i32, i32, i32
  }
}

</mosaic_0001>

<llo_original>
// kernel: downsample_conv_forward.3
$region0: #{downsample_conv_forward.3}
  #allocation0 [shape = 'u32[]', space=smem, size = 0x4, offset = 0x4, fixed_abs, tag = 'smem constant byte address 0x4 - core index']
  #allocation1 [shape = 'u32[72,128]{1,0:T(1,128)}', space=vmem, size = 0x9000, scoped, tag = 'internal scratch']
  %s0 = inlined_call_operand.vmem [shape: bf16[2,81,128], index: 0, kind: input, shape index: {}]
  %s1 = inlined_call_operand.vmem [shape: f32[1,128], index: 1, kind: input, shape index: {}]
  %s2 = inlined_call_operand.vmem [shape: f32[1,128], index: 2, kind: input, shape index: {}]
  %s3 = inlined_call_operand.vmem [shape: f32[2,81,128], index: 3, kind: output, shape index: {}]
  %s4 = sld [smem:[#allocation0]]
  $region45: #{downsample_conv_forward.3} parent=0
    _
  %s6 = ssub.s32 1, %s4
  %s7 = scalar_select 0, %s6, %s4
  loop: start=0, step=1, limit=4
  $region2: #{downsample_conv_forward.3} parent=0 // loop_pre_header
    _
  $region3: #{downsample_conv_forward.3} parent=0 // loop_header
    %s9 = sphi 0, %s13
    %p10 = scmp.ge.s32.totalorder %s9, 4
    %s19 = sphi 0, %s21
    %s22 = sphi 0, %s19
    %s23 = sphi 0, %s22
    %s39 = sphi 0, %s23
    %s43 = sphi 0, %s43
    %s45 = sphi 0, %s43
    %s46 = sphi 0, %s45
    %s60 = sphi 0, %s46
    %s64 = sphi 0, %s64
    %s66 = sphi 0, %s64
    %s67 = sphi 0, %s66
    %s81 = sphi 0, %s67
    %s87 = sphi 0, %s89
    %s90 = sphi 0, %s87
    %s91 = sphi 0, %s90
    %s107 = sphi 0, %s91
  $region4: #{downsample_conv_forward.3} parent=0 // loop_header_branch
    %12 = sbr.rel (%p10) target = $region8
  $region5: #{downsample_conv_forward.3} parent=0 // loop_body
    %s14 = ssub.s32 %s9, 1
    %s15 = ssub.s32 %s9, 2
    %s16 = sadd.s32 %s9, 1
    %s17 = ssub.s32 %s9, %s16
    %p18 = scmp.eq.s32.totalorder %s17, 0
    %s20 = sadd.s32 %s19, 1
    %s21 = scalar_select %p18, %s19, %s20
    %p24 = pneg %p18
    %p25 = scmp.eq.s32.totalorder %s9, 1
    %p26 = por %p24, %p25
    %p27 = scmp.ne.s32.totalorder %s19, %s22
    %p28 = scmp.eq.s32.totalorder %s9, 0
    %p29 = por %p27, %p28
    %p30 = scmp.ne.s32.totalorder %s19, %s22
    %p31 = scmp.eq.s32.totalorder %s14, 1
    %p32 = por %p30, %p31
    %p33 = scmp.ne.s32.totalorder %s22, %s23
    %p34 = scmp.eq.s32.totalorder %s14, 0
    %p35 = por %p33, %p34
    %p36 = scmp.ne.s32.totalorder %s22, %s23
    %p37 = scmp.eq.s32.totalorder %s15, 1
    %p38 = por %p36, %p37
    %p40 = scmp.ne.s32.totalorder %s23, %s39
    %p41 = scmp.eq.s32.totalorder %s15, 0
    %p42 = por %p40, %p41
    %s44 = sadd.s32 %s43, 1
    %p47 = scmp.eq.s32.totalorder %s9, 1
    %p48 = scmp.ne.s32.totalorder %s43, %s45
    %p49 = scmp.eq.s32.totalorder %s9, 0
    %p50 = por %p48, %p49
    %p51 = scmp.ne.s32.totalorder %s43, %s45
    %p52 = scmp.eq.s32.totalorder %s14, 1
    %p53 = por %p51, %p52
    %p54 = scmp.ne.s32.totalorder %s45, %s46
    %p55 = scmp.eq.s32.totalorder %s14, 0
    %p56 = por %p54, %p55
    %p57 = scmp.ne.s32.totalorder %s45, %s46
    %p58 = scmp.eq.s32.totalorder %s15, 1
    %p59 = por %p57, %p58
    %p61 = scmp.ne.s32.totalorder %s46, %s60
    %p62 = scmp.eq.s32.totalorder %s15, 0
    %p63 = por %p61, %p62
    %s65 = sadd.s32 %s64, 1
    %p68 = scmp.eq.s32.totalorder %s9, 1
    %p69 = scmp.ne.s32.totalorder %s64, %s66
    %p70 = scmp.eq.s32.totalorder %s9, 0
    %p71 = por %p69, %p70
    %p72 = scmp.ne.s32.totalorder %s64, %s66
    %p73 = scmp.eq.s32.totalorder %s14, 1
    %p74 = por %p72, %p73
    %p75 = scmp.ne.s32.totalorder %s66, %s67
    %p76 = scmp.eq.s32.totalorder %s14, 0
    %p77 = por %p75, %p76
    %p78 = scmp.ne.s32.totalorder %s66, %s67
    %p79 = scmp.eq.s32.totalorder %s15, 1
    %p80 = por %p78, %p79
    %p82 = scmp.ne.s32.totalorder %s67, %s81
    %p83 = scmp.eq.s32.totalorder %s15, 0
    %p84 = por %p82, %p83
    %s85 = ssub.s32 %s9, %s16
    %p86 = scmp.eq.s32.totalorder %s85, 0
    %s88 = sadd.s32 %s87, 1
    %s89 = scalar_select %p86, %s87, %s88
    %p92 = pneg %p86
    %p93 = scmp.eq.s32.totalorder %s9, 1
    %p94 = por %p92, %p93
    %p95 = scmp.ne.s32.totalorder %s87, %s90
    %p96 = scmp.eq.s32.totalorder %s9, 0
    %p97 = por %p95, %p96
    %p98 = scmp.ne.s32.totalorder %s87, %s90
    %p99 = scmp.eq.s32.totalorder %s14, 1
    %p100 = por %p98, %p99
    %p101 = scmp.ne.s32.totalorder %s90, %s91
    %p102 = scmp.eq.s32.totalorder %s14, 0
    %p103 = por %p101, %p102
    %p104 = scmp.ne.s32.totalorder %s90, %s91
    %p105 = scmp.eq.s32.totalorder %s15, 1
    %p106 = por %p104, %p105
    %p108 = scmp.ne.s32.totalorder %s91, %s107
    %p109 = scmp.eq.s32.totalorder %s15, 0
    %p110 = por %p108, %p109
    %p111 = scmp.le.s32.totalorder 1, %s9
    %p112 = scmp.lt.s32.totalorder %s9, 3
    %p113 = pnand %p111, %p112
    %p114 = pneg %p113
    // Predicated region
    $region9: #{downsample_conv_forward.3} parent=5 // pred_check
      _
    $region10: #{downsample_conv_forward.3} parent=5 // pred_check_branch
      %116 = sbr.rel (%p113) target = $region12
    $region11: #{downsample_conv_forward.3} parent=5 // pred_region
      %s117 = ssub.s32 %s9, 1
      // Predicated region
      $region13: #{downsample_conv_forward.3} parent=11 // pred_check
        %p118 = pneg %p56
      $region14: #{downsample_conv_forward.3} parent=11 // pred_check_branch
        %120 = sbr.rel (%p118) target = $region16
      $region15: #{downsample_conv_forward.3} parent=11 // pred_region
        _
      $region16: #{downsample_conv_forward.3} parent=11 // pred_fallthru
        _
      // Predicated region
      $region17: #{downsample_conv_forward.3} parent=11 // pred_check
        %p121 = pneg %p77
      $region18: #{downsample_conv_forward.3} parent=11 // pred_check_branch
        %123 = sbr.rel (%p121) target = $region20
      $region19: #{downsample_conv_forward.3} parent=11 // pred_region
        _
      $region20: #{downsample_conv_forward.3} parent=11 // pred_fallthru
        _
    $region12: #{downsample_conv_forward.3} parent=5 // pred_fallthru
      _
    %p124 = scmp.lt.s32.totalorder %s9, 2
    // Predicated region
    $region21: #{downsample_conv_forward.3} parent=5 // pred_check
      %p125 = pneg %p124
    $region22: #{downsample_conv_forward.3} parent=5 // pred_check_branch
      %127 = sbr.rel (%p125) target = $region24
    $region23: #{downsample_conv_forward.3} parent=5 // pred_region
      // Predicated region
      $region25: #{downsample_conv_forward.3} parent=23 // pred_check
        %p128 = pneg %p29
      $region26: #{downsample_conv_forward.3} parent=23 // pred_check_branch
        %130 = sbr.rel (%p128) target = $region28
      $region27: #{downsample_conv_forward.3} parent=23 // pred_region
        %p131 = scmp.lt.s32.totalorder %s9, 1
        %s132 = scalar_select %p131, %s9, 1
        %s133 = smul.addr %s132, 11
        %s134 = smul.addr %s133, 4
        %s135 = scalar_lea.vmem %s0, %s134
      $region28: #{downsample_conv_forward.3} parent=23 // pred_fallthru
        _
    $region24: #{downsample_conv_forward.3} parent=5 // pred_fallthru
      _
    %p136 = scmp.le.s32.totalorder 1, %s9
    %p137 = scmp.lt.s32.totalorder %s9, 3
    %p138 = pnand %p136, %p137
    %p139 = pneg %p138
    // Predicated region
    $region29: #{downsample_conv_forward.3} parent=5 // pred_check
      _
    $region30: #{downsample_conv_forward.3} parent=5 // pred_check_branch
      %141 = sbr.rel (%p138) target = $region32
    $region31: #{downsample_conv_forward.3} parent=5 // pred_region
      %s142 = ssub.s32 %s9, 1
      %p143 = scmp.lt.s32.totalorder %s14, 1
      %s144 = scalar_select %p143, %s14, 1
      %s145 = smul.addr %s144, 11
      %s146 = smul.addr %s145, 4
      %s147 = scalar_lea.vmem %s0, %s146
      %p148 = pneg %p35
      %p149 = pneg %p32
      %p150 = pneg %p56
      %p151 = pneg %p53
      %p152 = pneg %p77
      %p153 = pneg %p74
      %p154 = pneg %p103
      %p155 = pneg %p100
      %p156 = scmp.lt.s32.totalorder %s14, 1
      %s157 = scalar_select %p156, %s14, 1
      %s158 = smul.addr %s157, 11
      %s159 = smul.addr %s158, 8
      %s160 = scalar_lea.vmem %s3, %s159
      %p161 = scmp.lt.s32.totalorder %s14, 1
      %s162 = scalar_select %p161, %s14, 1
      %s163 = smul.addr %s162, 11
      %s164 = smul.addr %s163, 4
      %s165 = scalar_lea.vmem %s0, %s164
      %p166 = scmp.lt.s32.totalorder %s14, 1
      %s167 = scalar_select %p166, %s14, 1
      %s168 = smul.addr %s167, 11
      %s169 = smul.addr %s168, 8
      %s170 = scalar_lea.vmem %s3, %s169
      %v171 = vld [vmem:[%s165] sm:$0xf]
      %v172 = vld [vmem:[%s165 + $0x4] sm:$0xf]
      %v173 = vld [vmem:[%s165 + $0x8] sm:$0xf]
      %v174 = vld [vmem:[%s165 + $0xc] sm:$0xf]
      %v175 = vld [vmem:[%s165 + $0x10] sm:$0xf]
      %v176 = vld [vmem:[%s165 + $0x14] sm:$0xf]
      %v177 = vld [vmem:[%s165 + $0x18] sm:$0xf]
      %v178 = vld [vmem:[%s165 + $0x1c] sm:$0xf]
      %v179 = vld [vmem:[%s165 + $0x20] sm:$0xf]
      %v180 = vld [vmem:[%s165 + $0x24] sm:$0xf]
      %v181 = vld [vmem:[%s165 + $0x28] sm:$0x1]
      %v182 = vunpack.c.l.bf16 %v171
      %v183 = vunpack.c.l.bf16 %v172
      %v184 = vunpack.c.l.bf16 %v173
      %v185 = vunpack.c.l.bf16 %v174
      %v186 = vunpack.c.l.bf16 %v175
      %v187 = vunpack.c.l.bf16 %v176
      %v188 = vunpack.c.l.bf16 %v177
      %v189 = vunpack.c.l.bf16 %v178
      %v190 = vunpack.c.l.bf16 %v179
      %v191 = vunpack.c.l.bf16 %v180
      %v192 = vunpack.c.l.bf16 %v181
      %v193 = vld [vmem:[%s1] sm:$0x1]
      %v195 = vperm.slane %v193, 0
      %v197 = vmul.f32 %v182, %v195
      %v198 = vmul.f32 %v183, %v195
      %v199 = vmul.f32 %v184, %v195
      %v200 = vmul.f32 %v185, %v195
      %v201 = vmul.f32 %v186, %v195
      %v202 = vmul.f32 %v187, %v195
      %v203 = vmul.f32 %v188, %v195
      %v204 = vmul.f32 %v189, %v195
      %v205 = vmul.f32 %v190, %v195
      %v206 = vmul.f32 %v191, %v195
      %v207 = vmul.f32 %v192, %v195
      %v208 = vld [vmem:[%s2] sm:$0x1]
      %v210 = vperm.slane %v208, 0
      %v212 = vadd.f32 %v197, %v210
      %v213 = vadd.f32 %v198, %v210
      %v214 = vadd.f32 %v199, %v210
      %v215 = vadd.f32 %v200, %v210
      %v216 = vadd.f32 %v201, %v210
      %v217 = vadd.f32 %v202, %v210
      %v218 = vadd.f32 %v203, %v210
      %v219 = vadd.f32 %v204, %v210
      %v220 = vadd.f32 %v205, %v210
      %v221 = vadd.f32 %v206, %v210
      %v222 = vadd.f32 %v207, %v210
      %vm223 = vcmp.gt.f32.partialorder %v212, 0.0
      %vm224 = vcmp.gt.f32.partialorder %v213, 0.0
      %vm225 = vcmp.gt.f32.partialorder %v214, 0.0
      %vm226 = vcmp.gt.f32.partialorder %v215, 0.0
      %vm227 = vcmp.gt.f32.partialorder %v216, 0.0
      %vm228 = vcmp.gt.f32.partialorder %v217, 0.0
      %vm229 = vcmp.gt.f32.partialorder %v218, 0.0
      %vm230 = vcmp.gt.f32.partialorder %v219, 0.0
      %vm231 = vcmp.gt.f32.partialorder %v220, 0.0
      %vm232 = vcmp.gt.f32.partialorder %v221, 0.0
      %vm233 = vcmp.gt.f32.partialorder %v222, 0.0
      %v234 = vmul.f32 %v212, 0.2
      %v235 = vmul.f32 %v213, 0.2
      %v236 = vmul.f32 %v214, 0.2
      %v237 = vmul.f32 %v215, 0.2
      %v238 = vmul.f32 %v216, 0.2
      %v239 = vmul.f32 %v217, 0.2
      %v240 = vmul.f32 %v218, 0.2
      %v241 = vmul.f32 %v219, 0.2
      %v242 = vmul.f32 %v220, 0.2
      %v243 = vmul.f32 %v221, 0.2
      %v244 = vmul.f32 %v222, 0.2
      %v245 = vsel %vm223, %v212, %v234
      %v246 = vsel %vm224, %v213, %v235
      %v247 = vsel %vm225, %v214, %v236
      %v248 = vsel %vm226, %v215, %v237
      %v249 = vsel %vm227, %v216, %v238
      %v250 = vsel %vm228, %v217, %v239
      %v251 = vsel %vm229, %v218, %v240
      %v252 = vsel %vm230, %v219, %v241
      %v253 = vsel %vm231, %v220, %v242
      %v254 = vsel %vm232, %v221, %v243
      %v255 = vsel %vm233, %v222, %v244
      %256 = vst [vmem:[%s170] sm:$0xff] %v245
      %257 = vst [vmem:[%s170 + $0x8] sm:$0xff] %v246
      %258 = vst [vmem:[%s170 + $0x10] sm:$0xff] %v247
      %259 = vst [vmem:[%s170 + $0x18] sm:$0xff] %v248
      %260 = vst [vmem:[%s170 + $0x20] sm:$0xff] %v249
      %261 = vst [vmem:[%s170 + $0x28] sm:$0xff] %v250
      %262 = vst [vmem:[%s170 + $0x30] sm:$0xff] %v251
      %263 = vst [vmem:[%s170 + $0x38] sm:$0xff] %v252
      %264 = vst [vmem:[%s170 + $0x40] sm:$0xff] %v253
      %265 = vst [vmem:[%s170 + $0x48] sm:$0xff] %v254
      %266 = vst [vmem:[%s170 + $0x50] sm:$0x1] %v255
      %p267 = scmp.lt.s32.totalorder %s14, 1
      %s268 = scalar_select %p267, %s14, 1
      %s269 = smul.addr %s268, 11
      %s270 = smul.addr %s269, 8
      %s271 = scalar_lea.vmem %s3, %s270
      // Predicated region
      $region33: #{downsample_conv_forward.3} parent=31 // pred_check
        %p272 = pneg %p100
      $region34: #{downsample_conv_forward.3} parent=31 // pred_check_branch
        %274 = sbr.rel (%p272) target = $region36
      $region35: #{downsample_conv_forward.3} parent=31 // pred_region
        _
      $region36: #{downsample_conv_forward.3} parent=31 // pred_fallthru
        _
    $region32: #{downsample_conv_forward.3} parent=5 // pred_fallthru
      _
    %p275 = scmp.le.s32.totalorder 2, %s9
    // Predicated region
    $region37: #{downsample_conv_forward.3} parent=5 // pred_check
      %p276 = pneg %p275
    $region38: #{downsample_conv_forward.3} parent=5 // pred_check_branch
      %278 = sbr.rel (%p276) target = $region40
    $region39: #{downsample_conv_forward.3} parent=5 // pred_region
      %s279 = ssub.s32 %s9, 2
      // Predicated region
      $region41: #{downsample_conv_forward.3} parent=39 // pred_check
        %p280 = pneg %p106
      $region42: #{downsample_conv_forward.3} parent=39 // pred_check_branch
        %282 = sbr.rel (%p280) target = $region44
      $region43: #{downsample_conv_forward.3} parent=39 // pred_region
        %p283 = scmp.lt.s32.totalorder %s15, 1
        %s284 = scalar_select %p283, %s15, 1
        %s285 = smul.addr %s284, 11
        %s286 = smul.addr %s285, 8
        %s287 = scalar_lea.vmem %s3, %s286
      $region44: #{downsample_conv_forward.3} parent=39 // pred_fallthru
        _
    $region40: #{downsample_conv_forward.3} parent=5 // pred_fallthru
      _
  $region6: #{downsample_conv_forward.3} parent=0 // loop_footer
    %s13 = sadd.s32 1, %s9
  $region7: #{downsample_conv_forward.3} parent=0 // loop_footer_branch
    %8 = sbr.rel target = $region3
  $region8: #{downsample_conv_forward.3} parent=0 // loop_exit
    _

// kernel: downsample_conv_forward.2
$region0: #{downsample_conv_forward.2}
  #allocation0 [shape = 'u32[]', space=smem, size = 0x4, offset = 0x4, fixed_abs, tag = 'smem constant byte address 0x4 - core index']
  #allocation1 [shape = 'u32[72,128]{1,0:T(1,128)}', space=vmem, size = 0x9000, scoped, tag = 'internal scratch']
  %s0 = inlined_call_operand.vmem [shape: bf16[2,96,16], index: 0, kind: input, shape index: {}]
  %s1 = inlined_call_operand.vmem [shape: bf16[4,16,128], index: 1, kind: input, shape index: {}]
  %s2 = inlined_call_operand.vmem [shape: bf16[2,81,128], index: 2, kind: output, shape index: {0}]
  %s3 = inlined_call_operand.vmem [shape: f32[2,2,128], index: 3, kind: output, shape index: {1}]
  %4 = xla_tuple %s2, %s3
  %s5 = sld [smem:[#allocation0]]
  $region49: #{downsample_conv_forward.2} parent=0
    _
  %s7 = ssub.s32 1, %s5
  %s8 = scalar_select 0, %s7, %s5
  loop: start=0, step=1, limit=4
  $region2: #{downsample_conv_forward.2} parent=0 // loop_pre_header
    _
  $region3: #{downsample_conv_forward.2} parent=0 // loop_header
    %s10 = sphi 0, %s14
    %p11 = scmp.ge.s32.totalorder %s10, 4
    %s20 = sphi 0, %s22
    %s23 = sphi 0, %s20
    %s24 = sphi 0, %s23
    %s40 = sphi 0, %s24
    %s44 = sphi 0, %s44
    %s46 = sphi 0, %s44
    %s47 = sphi 0, %s46
    %s61 = sphi 0, %s47
    %s67 = sphi 0, %s69
    %s70 = sphi 0, %s67
    %s71 = sphi 0, %s70
    %s87 = sphi 0, %s71
    %s93 = sphi 0, %s95
    %s96 = sphi 0, %s93
    %s97 = sphi 0, %s96
    %s113 = sphi 0, %s97
  $region4: #{downsample_conv_forward.2} parent=0 // loop_header_branch
    %13 = sbr.rel (%p11) target = $region8
  $region5: #{downsample_conv_forward.2} parent=0 // loop_body
    %s15 = ssub.s32 %s10, 1
    %s16 = ssub.s32 %s10, 2
    %s17 = sadd.s32 %s10, 1
    %s18 = ssub.s32 %s10, %s17
    %p19 = scmp.eq.s32.totalorder %s18, 0
    %s21 = sadd.s32 %s20, 1
    %s22 = scalar_select %p19, %s20, %s21
    %p25 = pneg %p19
    %p26 = scmp.eq.s32.totalorder %s10, 1
    %p27 = por %p25, %p26
    %p28 = scmp.ne.s32.totalorder %s20, %s23
    %p29 = scmp.eq.s32.totalorder %s10, 0
    %p30 = por %p28, %p29
    %p31 = scmp.ne.s32.totalorder %s20, %s23
    %p32 = scmp.eq.s32.totalorder %s15, 1
    %p33 = por %p31, %p32
    %p34 = scmp.ne.s32.totalorder %s23, %s24
    %p35 = scmp.eq.s32.totalorder %s15, 0
    %p36 = por %p34, %p35
    %p37 = scmp.ne.s32.totalorder %s23, %s24
    %p38 = scmp.eq.s32.totalorder %s16, 1
    %p39 = por %p37, %p38
    %p41 = scmp.ne.s32.totalorder %s24, %s40
    %p42 = scmp.eq.s32.totalorder %s16, 0
    %p43 = por %p41, %p42
    %s45 = sadd.s32 %s44, 1
    %p48 = scmp.eq.s32.totalorder %s10, 1
    %p49 = scmp.ne.s32.totalorder %s44, %s46
    %p50 = scmp.eq.s32.totalorder %s10, 0
    %p51 = por %p49, %p50
    %p52 = scmp.ne.s32.totalorder %s44, %s46
    %p53 = scmp.eq.s32.totalorder %s15, 1
    %p54 = por %p52, %p53
    %p55 = scmp.ne.s32.totalorder %s46, %s47
    %p56 = scmp.eq.s32.totalorder %s15, 0
    %p57 = por %p55, %p56
    %p58 = scmp.ne.s32.totalorder %s46, %s47
    %p59 = scmp.eq.s32.totalorder %s16, 1
    %p60 = por %p58, %p59
    %p62 = scmp.ne.s32.totalorder %s47, %s61
    %p63 = scmp.eq.s32.totalorder %s16, 0
    %p64 = por %p62, %p63
    %s65 = ssub.s32 %s10, %s17
    %p66 = scmp.eq.s32.totalorder %s65, 0
    %s68 = sadd.s32 %s67, 1
    %s69 = scalar_select %p66, %s67, %s68
    %p72 = pneg %p66
    %p73 = scmp.eq.s32.totalorder %s10, 1
    %p74 = por %p72, %p73
    %p75 = scmp.ne.s32.totalorder %s67, %s70
    %p76 = scmp.eq.s32.totalorder %s10, 0
    %p77 = por %p75, %p76
    %p78 = scmp.ne.s32.totalorder %s67, %s70
    %p79 = scmp.eq.s32.totalorder %s15, 1
    %p80 = por %p78, %p79
    %p81 = scmp.ne.s32.totalorder %s70, %s71
    %p82 = scmp.eq.s32.totalorder %s15, 0
    %p83 = por %p81, %p82
    %p84 = scmp.ne.s32.totalorder %s70, %s71
    %p85 = scmp.eq.s32.totalorder %s16, 1
    %p86 = por %p84, %p85
    %p88 = scmp.ne.s32.totalorder %s71, %s87
    %p89 = scmp.eq.s32.totalorder %s16, 0
    %p90 = por %p88, %p89
    %s91 = ssub.s32 %s10, %s17
    %p92 = scmp.eq.s32.totalorder %s91, 0
    %s94 = sadd.s32 %s93, 1
    %s95 = scalar_select %p92, %s93, %s94
    %p98 = pneg %p92
    %p99 = scmp.eq.s32.totalorder %s10, 1
    %p100 = por %p98, %p99
    %p101 = scmp.ne.s32.totalorder %s93, %s96
    %p102 = scmp.eq.s32.totalorder %s10, 0
    %p103 = por %p101, %p102
    %p104 = scmp.ne.s32.totalorder %s93, %s96
    %p105 = scmp.eq.s32.totalorder %s15, 1
    %p106 = por %p104, %p105
    %p107 = scmp.ne.s32.totalorder %s96, %s97
    %p108 = scmp.eq.s32.totalorder %s15, 0
    %p109 = por %p107, %p108
    %p110 = scmp.ne.s32.totalorder %s96, %s97
    %p111 = scmp.eq.s32.totalorder %s16, 1
    %p112 = por %p110, %p111
    %p114 = scmp.ne.s32.totalorder %s97, %s113
    %p115 = scmp.eq.s32.totalorder %s16, 0
    %p116 = por %p114, %p115
    %p117 = scmp.le.s32.totalorder 1, %s10
    %p118 = scmp.lt.s32.totalorder %s10, 3
    %p119 = pnand %p117, %p118
    %p120 = pneg %p119
    // Predicated region
    $region9: #{downsample_conv_forward.2} parent=5 // pred_check
      _
    $region10: #{downsample_conv_forward.2} parent=5 // pred_check_branch
      %122 = sbr.rel (%p119) target = $region12
    $region11: #{downsample_conv_forward.2} parent=5 // pred_region
      %s123 = ssub.s32 %s10, 1
      // Predicated region
      $region13: #{downsample_conv_forward.2} parent=11 // pred_check
        %p124 = pneg %p57
      $region14: #{downsample_conv_forward.2} parent=11 // pred_check_branch
        %126 = sbr.rel (%p124) target = $region16
      $region15: #{downsample_conv_forward.2} parent=11 // pred_region
        _
      $region16: #{downsample_conv_forward.2} parent=11 // pred_fallthru
        _
    $region12: #{downsample_conv_forward.2} parent=5 // pred_fallthru
      _
    %p127 = scmp.lt.s32.totalorder %s10, 2
    // Predicated region
    $region17: #{downsample_conv_forward.2} parent=5 // pred_check
      %p128 = pneg %p127
    $region18: #{downsample_conv_forward.2} parent=5 // pred_check_branch
      %130 = sbr.rel (%p128) target = $region20
    $region19: #{downsample_conv_forward.2} parent=5 // pred_region
      // Predicated region
      $region21: #{downsample_conv_forward.2} parent=19 // pred_check
        %p131 = pneg %p30
      $region22: #{downsample_conv_forward.2} parent=19 // pred_check_branch
        %133 = sbr.rel (%p131) target = $region24
      $region23: #{downsample_conv_forward.2} parent=19 // pred_region
        %p134 = scmp.lt.s32.totalorder %s10, 1
        %s135 = scalar_select %p134, %s10, 1
        %s136 = smul.addr %s135, 12
        %s137 = smul.addr %s136, 4
        %s138 = scalar_lea.vmem %s0, %s137
      $region24: #{downsample_conv_forward.2} parent=19 // pred_fallthru
        _
    $region20: #{downsample_conv_forward.2} parent=5 // pred_fallthru
      _
    %p139 = scmp.le.s32.totalorder 1, %s10
    %p140 = scmp.lt.s32.totalorder %s10, 3
    %p141 = pnand %p139, %p140
    %p142 = pneg %p141
    // Predicated region
    $region25: #{downsample_conv_forward.2} parent=5 // pred_check
      _
    $region26: #{downsample_conv_forward.2} parent=5 // pred_check_branch
      %144 = sbr.rel (%p141) target = $region28
    $region27: #{downsample_conv_forward.2} parent=5 // pred_region
      %s145 = ssub.s32 %s10, 1
      %p146 = scmp.lt.s32.totalorder %s15, 1
      %s147 = scalar_select %p146, %s15, 1
      %s148 = smul.addr %s147, 12
      %s149 = smul.addr %s148, 4
      %s150 = scalar_lea.vmem %s0, %s149
      %p151 = pneg %p36
      %p152 = pneg %p33
      %p153 = pneg %p57
      %p154 = pneg %p54
      %p155 = pneg %p83
      %p156 = pneg %p80
      %p157 = scmp.lt.s32.totalorder %s15, 1
      %s158 = scalar_select %p157, %s15, 1
      %s159 = smul.addr %s158, 11
      %s160 = smul.addr %s159, 4
      %s161 = scalar_lea.vmem %s2, %s160
      %p162 = pneg %p109
      %p163 = pneg %p106
      %p164 = scmp.lt.s32.totalorder %s15, 1
      %s165 = scalar_select %p164, %s15, 1
      %s166 = smul.addr %s165, 2
      %s167 = scalar_lea.vmem %s3, %s166
      %p168 = scmp.lt.s32.totalorder %s15, 1
      %s169 = scalar_select %p168, %s15, 1
      %s170 = smul.addr %s169, 12
      %s171 = smul.addr %s170, 4
      %s172 = scalar_lea.vmem %s0, %s171
      %p173 = scmp.lt.s32.totalorder %s15, 1
      %s174 = scalar_select %p173, %s15, 1
      %s175 = smul.addr %s174, 11
      %s176 = smul.addr %s175, 4
      %s177 = scalar_lea.vmem %s2, %s176
      %p178 = scmp.lt.s32.totalorder %s15, 1
      %s179 = scalar_select %p178, %s15, 1
      %s180 = smul.addr %s179, 2
      %s181 = scalar_lea.vmem %s3, %s180
      %v183 = vld [vmem:[%s172] sm:$0xf]
      %v184 = vld [vmem:[%s172 + $0x4] sm:$0xf]
      %v185 = vld [vmem:[%s172 + $0x8] sm:$0xf]
      %v186 = vld [vmem:[%s172 + $0xc] sm:$0xf]
      %v187 = vld [vmem:[%s172 + $0x10] sm:$0xf]
      %v188 = vld [vmem:[%s172 + $0x14] sm:$0xf]
      %v189 = vld [vmem:[%s172 + $0x18] sm:$0xf]
      %v190 = vld [vmem:[%s172 + $0x1c] sm:$0xf]
      %v191 = vld [vmem:[%s172 + $0x20] sm:$0xf]
      %v192 = vld [vmem:[%s172 + $0x24] sm:$0xf]
      %v193 = vld [vmem:[%s172 + $0x28] sm:$0x1]
      %v194 = vld [vmem:[%s1] sm:$0xf]
      %v195 = vld [vmem:[%s1 + $0x4] sm:$0xf]
      %s196 = scalar_lea.vmem %s1, 8
      %v197 = vld [vmem:[%s196] sm:$0xf]
      %v198 = vld [vmem:[%s196 + $0x4] sm:$0xf]
      %v210 = vunpack.c.l.b16 %v183
      %v211 = vunpack.c.l.b16 %v184
      %v212 = vunpack.c.l.b16 %v185
      %v213 = vunpack.c.l.b16 %v186
      %v214 = vunpack.c.l.b16 %v187
      %v215 = vunpack.c.l.b16 %v188
      %v216 = vunpack.c.l.b16 %v189
      %v217 = vunpack.c.l.b16 %v190
      %v218 = vunpack.c.l.b16 %v191
      %v219 = vunpack.c.l.b16 %v192
      %v220 = vunpack.c.l.b16 %v193
      %v221 = vpack.c.b16 %v211, %v210
      %v222 = vpack.c.b16 %v213, %v212
      %v223 = vpack.c.b16 %v215, %v214
      %v224 = vpack.c.b16 %v217, %v216
      %v225 = vpack.c.b16 %v219, %v218
      %v226 = vpack.c.b16 %v220, %v220
      %vm227 = vsmask.f32 7424
      %v229 = vshrl.u32 %v221, 16
      %v231 = vshll.u32 %v221, 16
      %v233 = vrot.slane %v231, 1
      %v234 = vor.u32 %v229, %v233
      %v236 = vshll.u32 %v222, 16
      %v238 = vrot.slane %v236, 1
      %v239 = vsel %vm227, %v234, %v238
      %v240 = vshrl.u32 %v222, 16
      %v242 = vor.u32 %v240, %v238
      %v244 = vshll.u32 %v223, 16
      %v246 = vrot.slane %v244, 1
      %v247 = vsel %vm227, %v242, %v246
      %v248 = vshrl.u32 %v223, 16
      %v250 = vor.u32 %v248, %v246
      %v252 = vshll.u32 %v224, 16
      %v254 = vrot.slane %v252, 1
      %v255 = vsel %vm227, %v250, %v254
      %v256 = vshrl.u32 %v224, 16
      %v258 = vor.u32 %v256, %v254
      %v260 = vshll.u32 %v225, 16
      %v262 = vrot.slane %v260, 1
      %v263 = vsel %vm227, %v258, %v262
      %v264 = vshrl.u32 %v225, 16
      %v266 = vor.u32 %v264, %v262
      %v268 = vshll.u32 %v226, 16
      %v270 = vrot.slane %v268, 1
      %v271 = vsel %vm227, %v266, %v270
      %v272 = vshrl.u32 %v226, 16
      %v276 = vunpack.c.l.b16 %v197
      %v277 = vunpack.c.l.b16 %v198
      %v278 = vpack.c.b16 %v277, %v276
      %vm280 = vcmask 130048
      %v282 = vsel %vm280, %v239, 0
      %v285 = vsel %vm280, %v247, 0
      %v288 = vsel %vm280, %v255, 0
      %v291 = vsel %vm280, %v263, 0
      %v294 = vsel %vm280, %v271, 0
      %v297 = vsel %vm280, %v272, 0
      %299 = vmatpush.bf16.msra.mxu0 0
      %300 = vmatpush.bf16.msra.mxu0 0
      %301 = vmatpush.bf16.msra.mxu0 0
      %302 = vmatpush.bf16.msra.mxu0 0
      %303 = vmatpush.bf16.msra.mxu0 0
      %304 = vmatpush.bf16.msra.mxu0 0
      %305 = vmatpush.bf16.msra.mxu0 0
      %306 = vmatpush.bf16.msra.mxu0 %v278
      %307 = vmatmul.bf16.gmra.mxu0 %v282
      %v308 = vpop.f32.mrf.mxu0
      %v309 = vadd.f32 0.0, %v308
      %v310 = vpop.f32.mrf.mxu0
      %v311 = vadd.f32 0.0, %v310
      %312 = vmatmul.bf16.gmra.mxu0 %v285
      %v313 = vpop.f32.mrf.mxu0
      %v314 = vadd.f32 0.0, %v313
      %v315 = vpop.f32.mrf.mxu0
      %v316 = vadd.f32 0.0, %v315
      %317 = vmatmul.bf16.gmra.mxu0 %v288
      %v318 = vpop.f32.mrf.mxu0
      %v319 = vadd.f32 0.0, %v318
      %v320 = vpop.f32.mrf.mxu0
      %v321 = vadd.f32 0.0, %v320
      %322 = vmatmul.bf16.gmra.mxu0 %v291
      %v323 = vpop.f32.mrf.mxu0
      %v324 = vadd.f32 0.0, %v323
      %v325 = vpop.f32.mrf.mxu0
      %v326 = vadd.f32 0.0, %v325
      %327 = vmatmul.bf16.gmra.mxu0 %v294
      %v328 = vpop.f32.mrf.mxu0
      %v329 = vadd.f32 0.0, %v328
      %v330 = vpop.f32.mrf.mxu0
      %v331 = vadd.f32 0.0, %v330
      %332 = vmatmul.bf16.gmra.mxu0 %v297
      %v333 = vpop.f32.mrf.mxu0
      %v334 = vadd.f32 0.0, %v333
      %v335 = vpop.f32.mrf.mxu0
      %336 = vdwg.mxu0
      %v339 = vunpack.c.l.b16 %v194
      %v340 = vunpack.c.l.b16 %v195
      %v341 = vpack.c.b16 %v340, %v339
      %v343 = vsel %vm280, %v221, 0
      %v345 = vsel %vm280, %v222, 0
      %v347 = vsel %vm280, %v223, 0
      %v349 = vsel %vm280, %v224, 0
      %v351 = vsel %vm280, %v225, 0
      %v353 = vsel %vm280, %v226, 0
      %355 = vmatpush.bf16.msra.mxu0 0
      %356 = vmatpush.bf16.msra.mxu0 0
      %357 = vmatpush.bf16.msra.mxu0 0
      %358 = vmatpush.bf16.msra.mxu0 0
      %359 = vmatpush.bf16.msra.mxu0 0
      %360 = vmatpush.bf16.msra.mxu0 0
      %361 = vmatpush.bf16.msra.mxu0 0
      %362 = vmatpush.bf16.msra.mxu0 %v341
      %363 = vmatmul.bf16.gmra.mxu0 %v343
      %v364 = vpop.f32.mrf.mxu0
      %v365 = vadd.f32 %v309, %v364
      %v366 = vpop.f32.mrf.mxu0
      %v367 = vadd.f32 %v311, %v366
      %368 = vmatmul.bf16.gmra.mxu0 %v345
      %v369 = vpop.f32.mrf.mxu0
      %v370 = vadd.f32 %v314, %v369
      %v371 = vpop.f32.mrf.mxu0
      %v372 = vadd.f32 %v316, %v371
      %373 = vmatmul.bf16.gmra.mxu0 %v347
      %v374 = vpop.f32.mrf.mxu0
      %v375 = vadd.f32 %v319, %v374
      %v376 = vpop.f32.mrf.mxu0
      %v377 = vadd.f32 %v321, %v376
      %378 = vmatmul.bf16.gmra.mxu0 %v349
      %v379 = vpop.f32.mrf.mxu0
      %v380 = vadd.f32 %v324, %v379
      %v381 = vpop.f32.mrf.mxu0
      %v382 = vadd.f32 %v326, %v381
      %383 = vmatmul.bf16.gmra.mxu0 %v351
      %v384 = vpop.f32.mrf.mxu0
      %v385 = vadd.f32 %v329, %v384
      %v386 = vpop.f32.mrf.mxu0
      %v387 = vadd.f32 %v331, %v386
      %388 = vmatmul.bf16.gmra.mxu0 %v353
      %v389 = vpop.f32.mrf.mxu0
      %v390 = vadd.f32 %v334, %v389
      %v391 = vpop.f32.mrf.mxu0
      %392 = vdwg.mxu0
      %v393 = vld [vmem:[%s172 + $0x4] sm:$0xf]
      %v394 = vld [vmem:[%s172 + $0x8] sm:$0xf]
      %v395 = vld [vmem:[%s172 + $0xc] sm:$0xf]
      %v396 = vld [vmem:[%s172 + $0x10] sm:$0xf]
      %v397 = vld [vmem:[%s172 + $0x14] sm:$0xf]
      %v398 = vld [vmem:[%s172 + $0x18] sm:$0xf]
      %v399 = vld [vmem:[%s172 + $0x1c] sm:$0xf]
      %v400 = vld [vmem:[%s172 + $0x20] sm:$0xf]
      %v401 = vld [vmem:[%s172 + $0x24] sm:$0xf]
      %v402 = vld [vmem:[%s172 + $0x28] sm:$0xf]
      %v403 = vld [vmem:[%s172 + $0x2c] sm:$0x1]
      %s404 = scalar_lea.vmem %s1, 16
      %v405 = vld [vmem:[%s404] sm:$0xf]
      %v406 = vld [vmem:[%s404 + $0x4] sm:$0xf]
      %v418 = vunpack.c.l.b16 %v393
      %v419 = vunpack.c.l.b16 %v394
      %v420 = vunpack.c.l.b16 %v395
      %v421 = vunpack.c.l.b16 %v396
      %v422 = vunpack.c.l.b16 %v397
      %v423 = vunpack.c.l.b16 %v398
      %v424 = vunpack.c.l.b16 %v399
      %v425 = vunpack.c.l.b16 %v400
      %v426 = vunpack.c.l.b16 %v401
      %v427 = vunpack.c.l.b16 %v402
      %v428 = vunpack.c.l.b16 %v403
      %v429 = vpack.c.b16 %v419, %v418
      %v430 = vpack.c.b16 %v421, %v420
      %v431 = vpack.c.b16 %v423, %v422
      %v432 = vpack.c.b16 %v425, %v424
      %v433 = vpack.c.b16 %v427, %v426
      %v434 = vpack.c.b16 %v428, %v428
      %v436 = vshrl.u32 %v429, 16
      %v438 = vshll.u32 %v429, 16
      %v440 = vrot.slane %v438, 1
      %v441 = vor.u32 %v436, %v440
      %v443 = vshll.u32 %v430, 16
      %v445 = vrot.slane %v443, 1
      %v446 = vsel %vm227, %v441, %v445
      %v447 = vshrl.u32 %v430, 16
      %v449 = vor.u32 %v447, %v445
      %v451 = vshll.u32 %v431, 16
      %v453 = vrot.slane %v451, 1
      %v454 = vsel %vm227, %v449, %v453
      %v455 = vshrl.u32 %v431, 16
      %v457 = vor.u32 %v455, %v453
      %v459 = vshll.u32 %v432, 16
      %v461 = vrot.slane %v459, 1
      %v462 = vsel %vm227, %v457, %v461
      %v463 = vshrl.u32 %v432, 16
      %v465 = vor.u32 %v463, %v461
      %v467 = vshll.u32 %v433, 16
      %v469 = vrot.slane %v467, 1
      %v470 = vsel %vm227, %v465, %v469
      %v471 = vshrl.u32 %v433, 16
      %v473 = vor.u32 %v471, %v469
      %v475 = vshll.u32 %v434, 16
      %v477 = vrot.slane %v475, 1
      %v478 = vsel %vm227, %v473, %v477
      %v479 = vshrl.u32 %v434, 16
      %v483 = vunpack.c.l.b16 %v405
      %v484 = vunpack.c.l.b16 %v406
      %v485 = vpack.c.b16 %v484, %v483
      %v488 = vsel %vm280, %v446, 0
      %v491 = vsel %vm280, %v454, 0
      %v494 = vsel %vm280, %v462, 0
      %v497 = vsel %vm280, %v470, 0
      %v500 = vsel %vm280, %v478, 0
      %v503 = vsel %vm280, %v479, 0
      %505 = vmatpush.bf16.msra.mxu0 0
      %506 = vmatpush.bf16.msra.mxu0 0
      %507 = vmatpush.bf16.msra.mxu0 0
      %508 = vmatpush.bf16.msra.mxu0 0
      %509 = vmatpush.bf16.msra.mxu0 0
      %510 = vmatpush.bf16.msra.mxu0 0
      %511 = vmatpush.bf16.msra.mxu0 0
      %512 = vmatpush.bf16.msra.mxu0 %v485
      %513 = vmatmul.bf16.gmra.mxu0 %v488
      %v514 = vpop.f32.mrf.mxu0
      %v515 = vadd.f32 0.0, %v514
      %v516 = vpop.f32.mrf.mxu0
      %v517 = vadd.f32 0.0, %v516
      %518 = vmatmul.bf16.gmra.mxu0 %v491
      %v519 = vpop.f32.mrf.mxu0
      %v520 = vadd.f32 0.0, %v519
      %v521 = vpop.f32.mrf.mxu0
      %v522 = vadd.f32 0.0, %v521
      %523 = vmatmul.bf16.gmra.mxu0 %v494
      %v524 = vpop.f32.mrf.mxu0
      %v525 = vadd.f32 0.0, %v524
      %v526 = vpop.f32.mrf.mxu0
      %v527 = vadd.f32 0.0, %v526
      %528 = vmatmul.bf16.gmra.mxu0 %v497
      %v529 = vpop.f32.mrf.mxu0
      %v530 = vadd.f32 0.0, %v529
      %v531 = vpop.f32.mrf.mxu0
      %v532 = vadd.f32 0.0, %v531
      %533 = vmatmul.bf16.gmra.mxu0 %v500
      %v534 = vpop.f32.mrf.mxu0
      %v535 = vadd.f32 0.0, %v534
      %v536 = vpop.f32.mrf.mxu0
      %v537 = vadd.f32 0.0, %v536
      %538 = vmatmul.bf16.gmra.mxu0 %v503
      %v539 = vpop.f32.mrf.mxu0
      %v540 = vadd.f32 0.0, %v539
      %v541 = vpop.f32.mrf.mxu0
      %542 = vdwg.mxu0
      %v543 = vadd.f32 %v365, %v515
      %v544 = vadd.f32 %v367, %v517
      %v545 = vadd.f32 %v370, %v520
      %v546 = vadd.f32 %v372, %v522
      %v547 = vadd.f32 %v375, %v525
      %v548 = vadd.f32 %v377, %v527
      %v549 = vadd.f32 %v380, %v530
      %v550 = vadd.f32 %v382, %v532
      %v551 = vadd.f32 %v385, %v535
      %v552 = vadd.f32 %v387, %v537
      %v553 = vadd.f32 %v390, %v540
      %v554 = vld [vmem:[%s172 + $0x4] sm:$0xe]
      %v555 = vld [vmem:[%s172 + $0x2c] sm:$0x3]
      %s556 = scalar_lea.vmem %s1, 24
      %v557 = vld [vmem:[%s556] sm:$0xf]
      %v558 = vld [vmem:[%s556 + $0x4] sm:$0xf]
      %v561 = vunpack.c.l.b16 %v554
      %v562 = vunpack.c.l.b16 %v555
      %v563 = vpack.c.b16 %v419, %v561
      %v564 = vpack.c.b16 %v562, %v562
      %vm565 = vcmask 1046528
      %v566 = vrot.slane %v563, 1
      %v567 = vrot.slane %v430, 1
      %v568 = vsel %vm565, %v566, %v567
      %v569 = vrot.slane %v431, 1
      %v570 = vsel %vm565, %v567, %v569
      %v571 = vrot.slane %v432, 1
      %v572 = vsel %vm565, %v569, %v571
      %v573 = vrot.slane %v433, 1
      %v574 = vsel %vm565, %v571, %v573
      %v575 = vrot.slane %v564, 1
      %v576 = vsel %vm565, %v573, %v575
      %v579 = vunpack.c.l.b16 %v557
      %v580 = vunpack.c.l.b16 %v558
      %v581 = vpack.c.b16 %v580, %v579
      %v584 = vsel %vm280, %v568, 0
      %v587 = vsel %vm280, %v570, 0
      %v590 = vsel %vm280, %v572, 0
      %v593 = vsel %vm280, %v574, 0
      %v596 = vsel %vm280, %v576, 0
      %v599 = vsel %vm280, %v575, 0
      %601 = vmatpush.bf16.msra.mxu0 0
      %602 = vmatpush.bf16.msra.mxu0 0
      %603 = vmatpush.bf16.msra.mxu0 0
      %604 = vmatpush.bf16.msra.mxu0 0
      %605 = vmatpush.bf16.msra.mxu0 0
      %606 = vmatpush.bf16.msra.mxu0 0
      %607 = vmatpush.bf16.msra.mxu0 0
      %608 = vmatpush.bf16.msra.mxu0 %v581
      %609 = vmatmul.bf16.gmra.mxu0 %v584
      %v610 = vpop.f32.mrf.mxu0
      %v611 = vadd.f32 0.0, %v610
      %v612 = vpop.f32.mrf.mxu0
      %v613 = vadd.f32 0.0, %v612
      %614 = vmatmul.bf16.gmra.mxu0 %v587
      %v615 = vpop.f32.mrf.mxu0
      %v616 = vadd.f32 0.0, %v615
      %v617 = vpop.f32.mrf.mxu0
      %v618 = vadd.f32 0.0, %v617
      %619 = vmatmul.bf16.gmra.mxu0 %v590
      %v620 = vpop.f32.mrf.mxu0
      %v621 = vadd.f32 0.0, %v620
      %v622 = vpop.f32.mrf.mxu0
      %v623 = vadd.f32 0.0, %v622
      %624 = vmatmul.bf16.gmra.mxu0 %v593
      %v625 = vpop.f32.mrf.mxu0
      %v626 = vadd.f32 0.0, %v625
      %v627 = vpop.f32.mrf.mxu0
      %v628 = vadd.f32 0.0, %v627
      %629 = vmatmul.bf16.gmra.mxu0 %v596
      %v630 = vpop.f32.mrf.mxu0
      %v631 = vadd.f32 0.0, %v630
      %v632 = vpop.f32.mrf.mxu0
      %v633 = vadd.f32 0.0, %v632
      %634 = vmatmul.bf16.gmra.mxu0 %v599
      %v635 = vpop.f32.mrf.mxu0
      %v636 = vadd.f32 0.0, %v635
      %v637 = vpop.f32.mrf.mxu0
      %638 = vdwg.mxu0
      %v639 = vadd.f32 %v543, %v611
      %v640 = vadd.f32 %v544, %v613
      %v641 = vadd.f32 %v545, %v616
      %v642 = vadd.f32 %v546, %v618
      %v643 = vadd.f32 %v547, %v621
      %v644 = vadd.f32 %v548, %v623
      %v645 = vadd.f32 %v549, %v626
      %v646 = vadd.f32 %v550, %v628
      %v647 = vadd.f32 %v551, %v631
      %v648 = vadd.f32 %v552, %v633
      %v649 = vadd.f32 %v553, %v636
      %v650 = vpack.c.bf16 %v639, %v639
      %v651 = vpack.c.bf16 %v640, %v640
      %v652 = vpack.c.bf16 %v641, %v641
      %v653 = vpack.c.bf16 %v642, %v642
      %v654 = vpack.c.bf16 %v643, %v643
      %v655 = vpack.c.bf16 %v644, %v644
      %v656 = vpack.c.bf16 %v645, %v645
      %v657 = vpack.c.bf16 %v646, %v646
      %v658 = vpack.c.bf16 %v647, %v647
      %v659 = vpack.c.bf16 %v648, %v648
      %v660 = vpack.c.bf16 %v649, %v649
      %661 = vst [vmem:[%s177] sm:$0xf] %v650
      %662 = vst [vmem:[%s177 + $0x4] sm:$0xf] %v651
      %663 = vst [vmem:[%s177 + $0x8] sm:$0xf] %v652
      %664 = vst [vmem:[%s177 + $0xc] sm:$0xf] %v653
      %665 = vst [vmem:[%s177 + $0x10] sm:$0xf] %v654
      %666 = vst [vmem:[%s177 + $0x14] sm:$0xf] %v655
      %667 = vst [vmem:[%s177 + $0x18] sm:$0xf] %v656
      %668 = vst [vmem:[%s177 + $0x1c] sm:$0xf] %v657
      %669 = vst [vmem:[%s177 + $0x20] sm:$0xf] %v658
      %670 = vst [vmem:[%s177 + $0x24] sm:$0xf] %v659
      %vm671 = vcmask 1040384
      %vm672 = vsmask.f32 256
      %vm673 = vmand %vm671, %vm672
      %v674 = vld [vmem:[%s177 + $0x28] sm:$0x1]
      %v675 = vsel %vm673, %v660, %v674
      %676 = vst [vmem:[%s177 + $0x28] sm:$0x1] %v675
      %v677 = vlaneseq
      %v678 = vshrl.u32 %v677, 7
      %v679 = vadd.s32 %v678, 8
      %v680 = vadd.s32 %v678, 16
      %v681 = vadd.s32 %v678, 24
      %v682 = vadd.s32 %v678, 32
      %v683 = vadd.s32 %v678, 40
      %v684 = vadd.s32 %v678, 48
      %v685 = vadd.s32 %v678, 56
      %v686 = vadd.s32 %v678, 64
      %v687 = vadd.s32 %v678, 72
      %v688 = vadd.s32 %v678, 80
      %vm689 = vcmp.lt.s32.totalorder %v678, 0
      %v690 = vsub.s32 0, %v678
      %v691 = vsel %vm689, %v690, %v678
      %v692 = vand.u32 %v691, 65535
      %v693 = vshrl.u32 %v691, 16
      %v695 = vmul.u32 %v692, 14564
      %v696 = vmul.u32 %v692, 58254
      %v697 = vmul.u32 %v693, 14564
      %v698 = vmul.u32 %v693, 58254
      %v699 = vshll.u32 %v696, 16
      %v700 = vshrl.u32 %v696, 16
      %v701 = vshll.u32 %v697, 16
      %v702 = vshrl.u32 %v697, 16
      %vm703 = vc.u32 %v695, %v699
      %v704 = vsel %vm703, 1, 0
      %v705 = vadd.s32 %v695, %v699
      %v706 = vadd.s32 %v698, %v704
      %vm707 = vc.u32 %v705, %v701
      %v708 = vsel %vm707, 1, 0
      %v709 = vadd.s32 %v705, %v701
      %v710 = vadd.s32 %v706, %v708
      %v711 = vadd.s32 %v710, %v700
      %v712 = vadd.s32 %v711, %v702
      %v713 = vshrl.u32 %v712, 3
      %v714 = vmul.u32 %v713, 9
      %v715 = vsub.s32 %v691, %v714
      %v716 = vsub.s32 0, %v715
      %v717 = vsel %vm689, %v716, %v715
      %vm718 = vcmp.lt.s32.totalorder %v679, 0
      %v719 = vsub.s32 0, %v679
      %v720 = vsel %vm718, %v719, %v679
      %v721 = vand.u32 %v720, 65535
      %v722 = vshrl.u32 %v720, 16
      %v724 = vmul.u32 %v721, 14564
      %v725 = vmul.u32 %v721, 58254
      %v726 = vmul.u32 %v722, 14564
      %v727 = vmul.u32 %v722, 58254
      %v728 = vshll.u32 %v725, 16
      %v729 = vshrl.u32 %v725, 16
      %v730 = vshll.u32 %v726, 16
      %v731 = vshrl.u32 %v726, 16
      %vm732 = vc.u32 %v724, %v728
      %v733 = vsel %vm732, 1, 0
      %v734 = vadd.s32 %v724, %v728
      %v735 = vadd.s32 %v727, %v733
      %vm736 = vc.u32 %v734, %v730
      %v737 = vsel %vm736, 1, 0
      %v738 = vadd.s32 %v734, %v730
      %v739 = vadd.s32 %v735, %v737
      %v740 = vadd.s32 %v739, %v729
      %v741 = vadd.s32 %v740, %v731
      %v742 = vshrl.u32 %v741, 3
      %v743 = vmul.u32 %v742, 9
      %v744 = vsub.s32 %v720, %v743
      %v745 = vsub.s32 0, %v744
      %v746 = vsel %vm718, %v745, %v744
      %vm747 = vcmp.lt.s32.totalorder %v680, 0
      %v748 = vsub.s32 0, %v680
      %v749 = vsel %vm747, %v748, %v680
      %v750 = vand.u32 %v749, 65535
      %v751 = vshrl.u32 %v749, 16
      %v753 = vmul.u32 %v750, 14564
      %v754 = vmul.u32 %v750, 58254
      %v755 = vmul.u32 %v751, 14564
      %v756 = vmul.u32 %v751, 58254
      %v757 = vshll.u32 %v754, 16
      %v758 = vshrl.u32 %v754, 16
      %v759 = vshll.u32 %v755, 16
      %v760 = vshrl.u32 %v755, 16
      %vm761 = vc.u32 %v753, %v757
      %v762 = vsel %vm761, 1, 0
      %v763 = vadd.s32 %v753, %v757
      %v764 = vadd.s32 %v756, %v762
      %vm765 = vc.u32 %v763, %v759
      %v766 = vsel %vm765, 1, 0
      %v767 = vadd.s32 %v763, %v759
      %v768 = vadd.s32 %v764, %v766
      %v769 = vadd.s32 %v768, %v758
      %v770 = vadd.s32 %v769, %v760
      %v771 = vshrl.u32 %v770, 3
      %v772 = vmul.u32 %v771, 9
      %v773 = vsub.s32 %v749, %v772
      %v774 = vsub.s32 0, %v773
      %v775 = vsel %vm747, %v774, %v773
      %vm776 = vcmp.lt.s32.totalorder %v681, 0
      %v777 = vsub.s32 0, %v681
      %v778 = vsel %vm776, %v777, %v681
      %v779 = vand.u32 %v778, 65535
      %v780 = vshrl.u32 %v778, 16
      %v782 = vmul.u32 %v779, 14564
      %v783 = vmul.u32 %v779, 58254
      %v784 = vmul.u32 %v780, 14564
      %v785 = vmul.u32 %v780, 58254
      %v786 = vshll.u32 %v783, 16
      %v787 = vshrl.u32 %v783, 16
      %v788 = vshll.u32 %v784, 16
      %v789 = vshrl.u32 %v784, 16
      %vm790 = vc.u32 %v782, %v786
      %v791 = vsel %vm790, 1, 0
      %v792 = vadd.s32 %v782, %v786
      %v793 = vadd.s32 %v785, %v791
      %vm794 = vc.u32 %v792, %v788
      %v795 = vsel %vm794, 1, 0
      %v796 = vadd.s32 %v792, %v788
      %v797 = vadd.s32 %v793, %v795
      %v798 = vadd.s32 %v797, %v787
      %v799 = vadd.s32 %v798, %v789
      %v800 = vshrl.u32 %v799, 3
      %v801 = vmul.u32 %v800, 9
      %v802 = vsub.s32 %v778, %v801
      %v803 = vsub.s32 0, %v802
      %v804 = vsel %vm776, %v803, %v802
      %vm805 = vcmp.lt.s32.totalorder %v682, 0
      %v806 = vsub.s32 0, %v682
      %v807 = vsel %vm805, %v806, %v682
      %v808 = vand.u32 %v807, 65535
      %v809 = vshrl.u32 %v807, 16
      %v811 = vmul.u32 %v808, 14564
      %v812 = vmul.u32 %v808, 58254
      %v813 = vmul.u32 %v809, 14564
      %v814 = vmul.u32 %v809, 58254
      %v815 = vshll.u32 %v812, 16
      %v816 = vshrl.u32 %v812, 16
      %v817 = vshll.u32 %v813, 16
      %v818 = vshrl.u32 %v813, 16
      %vm819 = vc.u32 %v811, %v815
      %v820 = vsel %vm819, 1, 0
      %v821 = vadd.s32 %v811, %v815
      %v822 = vadd.s32 %v814, %v820
      %vm823 = vc.u32 %v821, %v817
      %v824 = vsel %vm823, 1, 0
      %v825 = vadd.s32 %v821, %v817
      %v826 = vadd.s32 %v822, %v824
      %v827 = vadd.s32 %v826, %v816
      %v828 = vadd.s32 %v827, %v818
      %v829 = vshrl.u32 %v828, 3
      %v830 = vmul.u32 %v829, 9
      %v831 = vsub.s32 %v807, %v830
      %v832 = vsub.s32 0, %v831
      %v833 = vsel %vm805, %v832, %v831
      %vm834 = vcmp.lt.s32.totalorder %v683, 0
      %v835 = vsub.s32 0, %v683
      %v836 = vsel %vm834, %v835, %v683
      %v837 = vand.u32 %v836, 65535
      %v838 = vshrl.u32 %v836, 16
      %v840 = vmul.u32 %v837, 14564
      %v841 = vmul.u32 %v837, 58254
      %v842 = vmul.u32 %v838, 14564
      %v843 = vmul.u32 %v838, 58254
      %v844 = vshll.u32 %v841, 16
      %v845 = vshrl.u32 %v841, 16
      %v846 = vshll.u32 %v842, 16
      %v847 = vshrl.u32 %v842, 16
      %vm848 = vc.u32 %v840, %v844
      %v849 = vsel %vm848, 1, 0
      %v850 = vadd.s32 %v840, %v844
      %v851 = vadd.s32 %v843, %v849
      %vm852 = vc.u32 %v850, %v846
      %v853 = vsel %vm852, 1, 0
      %v854 = vadd.s32 %v850, %v846
      %v855 = vadd.s32 %v851, %v853
      %v856 = vadd.s32 %v855, %v845
      %v857 = vadd.s32 %v856, %v847
      %v858 = vshrl.u32 %v857, 3
      %v859 = vmul.u32 %v858, 9
      %v860 = vsub.s32 %v836, %v859
      %v861 = vsub.s32 0, %v860
      %v862 = vsel %vm834, %v861, %v860
      %vm863 = vcmp.lt.s32.totalorder %v684, 0
      %v864 = vsub.s32 0, %v684
      %v865 = vsel %vm863, %v864, %v684
      %v866 = vand.u32 %v865, 65535
      %v867 = vshrl.u32 %v865, 16
      %v869 = vmul.u32 %v866, 14564
      %v870 = vmul.u32 %v866, 58254
      %v871 = vmul.u32 %v867, 14564
      %v872 = vmul.u32 %v867, 58254
      %v873 = vshll.u32 %v870, 16
      %v874 = vshrl.u32 %v870, 16
      %v875 = vshll.u32 %v871, 16
      %v876 = vshrl.u32 %v871, 16
      %vm877 = vc.u32 %v869, %v873
      %v878 = vsel %vm877, 1, 0
      %v879 = vadd.s32 %v869, %v873
      %v880 = vadd.s32 %v872, %v878
      %vm881 = vc.u32 %v879, %v875
      %v882 = vsel %vm881, 1, 0
      %v883 = vadd.s32 %v879, %v875
      %v884 = vadd.s32 %v880, %v882
      %v885 = vadd.s32 %v884, %v874
      %v886 = vadd.s32 %v885, %v876
      %v887 = vshrl.u32 %v886, 3
      %v888 = vmul.u32 %v887, 9
      %v889 = vsub.s32 %v865, %v888
      %v890 = vsub.s32 0, %v889
      %v891 = vsel %vm863, %v890, %v889
      %vm892 = vcmp.lt.s32.totalorder %v685, 0
      %v893 = vsub.s32 0, %v685
      %v894 = vsel %vm892, %v893, %v685
      %v895 = vand.u32 %v894, 65535
      %v896 = vshrl.u32 %v894, 16
      %v898 = vmul.u32 %v895, 14564
      %v899 = vmul.u32 %v895, 58254
      %v900 = vmul.u32 %v896, 14564
      %v901 = vmul.u32 %v896, 58254
      %v902 = vshll.u32 %v899, 16
      %v903 = vshrl.u32 %v899, 16
      %v904 = vshll.u32 %v900, 16
      %v905 = vshrl.u32 %v900, 16
      %vm906 = vc.u32 %v898, %v902
      %v907 = vsel %vm906, 1, 0
      %v908 = vadd.s32 %v898, %v902
      %v909 = vadd.s32 %v901, %v907
      %vm910 = vc.u32 %v908, %v904
      %v911 = vsel %vm910, 1, 0
      %v912 = vadd.s32 %v908, %v904
      %v913 = vadd.s32 %v909, %v911
      %v914 = vadd.s32 %v913, %v903
      %v915 = vadd.s32 %v914, %v905
      %v916 = vshrl.u32 %v915, 3
      %v917 = vmul.u32 %v916, 9
      %v918 = vsub.s32 %v894, %v917
      %v919 = vsub.s32 0, %v918
      %v920 = vsel %vm892, %v919, %v918
      %vm921 = vcmp.lt.s32.totalorder %v686, 0
      %v922 = vsub.s32 0, %v686
      %v923 = vsel %vm921, %v922, %v686
      %v924 = vand.u32 %v923, 65535
      %v925 = vshrl.u32 %v923, 16
      %v927 = vmul.u32 %v924, 14564
      %v928 = vmul.u32 %v924, 58254
      %v929 = vmul.u32 %v925, 14564
      %v930 = vmul.u32 %v925, 58254
      %v931 = vshll.u32 %v928, 16
      %v932 = vshrl.u32 %v928, 16
      %v933 = vshll.u32 %v929, 16
      %v934 = vshrl.u32 %v929, 16
      %vm935 = vc.u32 %v927, %v931
      %v936 = vsel %vm935, 1, 0
      %v937 = vadd.s32 %v927, %v931
      %v938 = vadd.s32 %v930, %v936
      %vm939 = vc.u32 %v937, %v933
      %v940 = vsel %vm939, 1, 0
      %v941 = vadd.s32 %v937, %v933
      %v942 = vadd.s32 %v938, %v940
      %v943 = vadd.s32 %v942, %v932
      %v944 = vadd.s32 %v943, %v934
      %v945 = vshrl.u32 %v944, 3
      %v946 = vmul.u32 %v945, 9
      %v947 = vsub.s32 %v923, %v946
      %v948 = vsub.s32 0, %v947
      %v949 = vsel %vm921, %v948, %v947
      %vm950 = vcmp.lt.s32.totalorder %v687, 0
      %v951 = vsub.s32 0, %v687
      %v952 = vsel %vm950, %v951, %v687
      %v953 = vand.u32 %v952, 65535
      %v954 = vshrl.u32 %v952, 16
      %v956 = vmul.u32 %v953, 14564
      %v957 = vmul.u32 %v953, 58254
      %v958 = vmul.u32 %v954, 14564
      %v959 = vmul.u32 %v954, 58254
      %v960 = vshll.u32 %v957, 16
      %v961 = vshrl.u32 %v957, 16
      %v962 = vshll.u32 %v958, 16
      %v963 = vshrl.u32 %v958, 16
      %vm964 = vc.u32 %v956, %v960
      %v965 = vsel %vm964, 1, 0
      %v966 = vadd.s32 %v956, %v960
      %v967 = vadd.s32 %v959, %v965
      %vm968 = vc.u32 %v966, %v962
      %v969 = vsel %vm968, 1, 0
      %v970 = vadd.s32 %v966, %v962
      %v971 = vadd.s32 %v967, %v969
      %v972 = vadd.s32 %v971, %v961
      %v973 = vadd.s32 %v972, %v963
      %v974 = vshrl.u32 %v973, 3
      %v975 = vmul.u32 %v974, 9
      %v976 = vsub.s32 %v952, %v975
      %v977 = vsub.s32 0, %v976
      %v978 = vsel %vm950, %v977, %v976
      %vm979 = vcmp.lt.s32.totalorder %v688, 0
      %v980 = vsub.s32 0, %v688
      %v981 = vsel %vm979, %v980, %v688
      %v982 = vand.u32 %v981, 65535
      %v983 = vshrl.u32 %v981, 16
      %v985 = vmul.u32 %v982, 14564
      %v986 = vmul.u32 %v982, 58254
      %v987 = vmul.u32 %v983, 14564
      %v988 = vmul.u32 %v983, 58254
      %v989 = vshll.u32 %v986, 16
      %v990 = vshrl.u32 %v986, 16
      %v991 = vshll.u32 %v987, 16
      %v992 = vshrl.u32 %v987, 16
      %vm993 = vc.u32 %v985, %v989
      %v994 = vsel %vm993, 1, 0
      %v995 = vadd.s32 %v985, %v989
      %v996 = vadd.s32 %v988, %v994
      %vm997 = vc.u32 %v995, %v991
      %v998 = vsel %vm997, 1, 0
      %v999 = vadd.s32 %v995, %v991
      %v1000 = vadd.s32 %v996, %v998
      %v1001 = vadd.s32 %v1000, %v990
      %v1002 = vadd.s32 %v1001, %v992
      %v1003 = vshrl.u32 %v1002, 3
      %v1004 = vmul.u32 %v1003, 9
      %v1005 = vsub.s32 %v981, %v1004
      %v1006 = vsub.s32 0, %v1005
      %v1007 = vsel %vm979, %v1006, %v1005
      %vm1008 = vcmp.ne.s32.totalorder %v717, 0
      %vm1009 = vcmp.ne.s32.totalorder %v746, 0
      %vm1010 = vcmp.ne.s32.totalorder %v775, 0
      %vm1011 = vcmp.ne.s32.totalorder %v804, 0
      %vm1012 = vcmp.ne.s32.totalorder %v833, 0
      %vm1013 = vcmp.ne.s32.totalorder %v862, 0
      %vm1014 = vcmp.ne.s32.totalorder %v891, 0
      %vm1015 = vcmp.ne.s32.totalorder %v920, 0
      %vm1016 = vcmp.ne.s32.totalorder %v949, 0
      %vm1017 = vcmp.ne.s32.totalorder %v978, 0
      %vm1018 = vcmp.ne.s32.totalorder %v1007, 0
      %vm1019 = vcmp.lt.s32.totalorder %v717, 0
      %vm1020 = vcmp.lt.s32.totalorder %v746, 0
      %vm1021 = vcmp.lt.s32.totalorder %v775, 0
      %vm1022 = vcmp.lt.s32.totalorder %v804, 0
      %vm1023 = vcmp.lt.s32.totalorder %v833, 0
      %vm1024 = vcmp.lt.s32.totalorder %v862, 0
      %vm1025 = vcmp.lt.s32.totalorder %v891, 0
      %vm1026 = vcmp.lt.s32.totalorder %v920, 0
      %vm1027 = vcmp.lt.s32.totalorder %v949, 0
      %vm1028 = vcmp.lt.s32.totalorder %v978, 0
      %vm1029 = vcmp.lt.s32.totalorder %v1007, 0
      %vm1030 = vmand %vm1019, %vm1008
      %vm1031 = vmand %vm1020, %vm1009
      %vm1032 = vmand %vm1021, %vm1010
      %vm1033 = vmand %vm1022, %vm1011
      %vm1034 = vmand %vm1023, %vm1012
      %vm1035 = vmand %vm1024, %vm1013
      %vm1036 = vmand %vm1025, %vm1014
      %vm1037 = vmand %vm1026, %vm1015
      %vm1038 = vmand %vm1027, %vm1016
      %vm1039 = vmand %vm1028, %vm1017
      %vm1040 = vmand %vm1029, %vm1018
      %v1041 = vadd.s32 %v717, 9
      %v1042 = vadd.s32 %v746, 9
      %v1043 = vadd.s32 %v775, 9
      %v1044 = vadd.s32 %v804, 9
      %v1045 = vadd.s32 %v833, 9
      %v1046 = vadd.s32 %v862, 9
      %v1047 = vadd.s32 %v891, 9
      %v1048 = vadd.s32 %v920, 9
      %v1049 = vadd.s32 %v949, 9
      %v1050 = vadd.s32 %v978, 9
      %v1051 = vadd.s32 %v1007, 9
      %v1052 = vsel %vm1030, %v1041, %v717
      %v1053 = vsel %vm1031, %v1042, %v746
      %v1054 = vsel %vm1032, %v1043, %v775
      %v1055 = vsel %vm1033, %v1044, %v804
      %v1056 = vsel %vm1034, %v1045, %v833
      %v1057 = vsel %vm1035, %v1046, %v862
      %v1058 = vsel %vm1036, %v1047, %v891
      %v1059 = vsel %vm1037, %v1048, %v920
      %v1060 = vsel %vm1038, %v1049, %v949
      %v1061 = vsel %vm1039, %v1050, %v978
      %v1062 = vsel %vm1040, %v1051, %v1007
      %vm1063 = vcmp.lt.s32.totalorder %v1052, 8
      %vm1064 = vcmp.lt.s32.totalorder %v1053, 8
      %vm1065 = vcmp.lt.s32.totalorder %v1054, 8
      %vm1066 = vcmp.lt.s32.totalorder %v1055, 8
      %vm1067 = vcmp.lt.s32.totalorder %v1056, 8
      %vm1068 = vcmp.lt.s32.totalorder %v1057, 8
      %vm1069 = vcmp.lt.s32.totalorder %v1058, 8
      %vm1070 = vcmp.lt.s32.totalorder %v1059, 8
      %vm1071 = vcmp.lt.s32.totalorder %v1060, 8
      %vm1072 = vcmp.lt.s32.totalorder %v1061, 8
      %vm1073 = vcmp.lt.s32.totalorder %v1062, 8
      %vm1074 = vcmp.lt.s32.totalorder %v678, 72
      %vm1075 = vcmp.lt.s32.totalorder %v679, 72
      %vm1076 = vcmp.lt.s32.totalorder %v680, 72
      %vm1077 = vcmp.lt.s32.totalorder %v681, 72
      %vm1078 = vcmp.lt.s32.totalorder %v682, 72
      %vm1079 = vcmp.lt.s32.totalorder %v683, 72
      %vm1080 = vcmp.lt.s32.totalorder %v684, 72
      %vm1081 = vcmp.lt.s32.totalorder %v685, 72
      %vm1082 = vcmp.lt.s32.totalorder %v686, 72
      %vm1083 = vcmp.lt.s32.totalorder %v687, 72
      %vm1084 = vcmp.lt.s32.totalorder %v688, 72
      %vm1085 = vmand %vm1063, %vm1074
      %vm1086 = vmand %vm1064, %vm1075
      %vm1087 = vmand %vm1065, %vm1076
      %vm1088 = vmand %vm1066, %vm1077
      %vm1089 = vmand %vm1067, %vm1078
      %vm1090 = vmand %vm1068, %vm1079
      %vm1091 = vmand %vm1069, %vm1080
      %vm1092 = vmand %vm1070, %vm1081
      %vm1093 = vmand %vm1071, %vm1082
      %vm1094 = vmand %vm1072, %vm1083
      %vm1095 = vmand %vm1073, %vm1084
      %v1096 = vsel %vm1085, 1, 0
      %v1097 = vsel %vm1086, 1, 0
      %v1098 = vsel %vm1087, 1, 0
      %v1099 = vsel %vm1088, 1, 0
      %v1100 = vsel %vm1089, 1, 0
      %v1101 = vsel %vm1090, 1, 0
      %v1102 = vsel %vm1091, 1, 0
      %v1103 = vsel %vm1092, 1, 0
      %v1104 = vsel %vm1093, 1, 0
      %v1105 = vsel %vm1094, 1, 0
      %v1106 = vsel %vm1095, 1, 0
      %vm1107 = vcmp.eq.s32.totalorder %v1096, 1
      %vm1108 = vcmp.eq.s32.totalorder %v1097, 1
      %vm1109 = vcmp.eq.s32.totalorder %v1098, 1
      %vm1110 = vcmp.eq.s32.totalorder %v1099, 1
      %vm1111 = vcmp.eq.s32.totalorder %v1100, 1
      %vm1112 = vcmp.eq.s32.totalorder %v1101, 1
      %vm1113 = vcmp.eq.s32.totalorder %v1102, 1
      %vm1114 = vcmp.eq.s32.totalorder %v1103, 1
      %vm1115 = vcmp.eq.s32.totalorder %v1104, 1
      %vm1116 = vcmp.eq.s32.totalorder %v1105, 1
      %vm1117 = vcmp.eq.s32.totalorder %v1106, 1
      %v1118 = vsel %vm1107, %v639, 0.0
      %v1119 = vsel %vm1108, %v640, 0.0
      %v1120 = vsel %vm1109, %v641, 0.0
      %v1121 = vsel %vm1110, %v642, 0.0
      %v1122 = vsel %vm1111, %v643, 0.0
      %v1123 = vsel %vm1112, %v644, 0.0
      %v1124 = vsel %vm1113, %v645, 0.0
      %v1125 = vsel %vm1114, %v646, 0.0
      %v1126 = vsel %vm1115, %v647, 0.0
      %v1127 = vsel %vm1116, %v648, 0.0
      %v1128 = vsel %vm1117, %v649, 0.0
      %v1129 = vadd.f32 %v1118, %v1119
      %v1130 = vadd.f32 %v1129, %v1120
      %v1131 = vadd.f32 %v1130, %v1121
      %v1132 = vadd.f32 %v1131, %v1122
      %v1133 = vadd.f32 %v1132, %v1123
      %v1134 = vadd.f32 %v1133, %v1124
      %v1135 = vadd.f32 %v1134, %v1125
      %v1136 = vadd.f32 %v1135, %v1126
      %v1137 = vadd.f32 %v1136, %v1127
      %vm1138 = vcmask 1040384
      %v1139 = vsel %vm1138, %v1128, 0.0
      %v1140 = vadd.f32 %v1137, %v1139
      %v1141 = vrot.slane %v1140, 4
      %v1142 = vadd.f32 %v1140, %v1141
      %v1143 = vrot.slane %v1142, 2
      %v1144 = vadd.f32 %v1142, %v1143
      %v1145 = vrot.slane %v1144, 1
      %v1146 = vadd.f32 %v1144, %v1145
      %1147 = vst [vmem:[%s181] sm:$0x1] %v1146
      %v1148 = vmul.f32 %v1118, %v1118
      %v1149 = vmul.f32 %v1119, %v1119
      %v1150 = vmul.f32 %v1120, %v1120
      %v1151 = vmul.f32 %v1121, %v1121
      %v1152 = vmul.f32 %v1122, %v1122
      %v1153 = vmul.f32 %v1123, %v1123
      %v1154 = vmul.f32 %v1124, %v1124
      %v1155 = vmul.f32 %v1125, %v1125
      %v1156 = vmul.f32 %v1126, %v1126
      %v1157 = vmul.f32 %v1127, %v1127
      %v1158 = vmul.f32 %v1128, %v1128
      %v1159 = vadd.f32 %v1148, %v1149
      %v1160 = vadd.f32 %v1159, %v1150
      %v1161 = vadd.f32 %v1160, %v1151
      %v1162 = vadd.f32 %v1161, %v1152
      %v1163 = vadd.f32 %v1162, %v1153
      %v1164 = vadd.f32 %v1163, %v1154
      %v1165 = vadd.f32 %v1164, %v1155
      %v1166 = vadd.f32 %v1165, %v1156
      %v1167 = vadd.f32 %v1166, %v1157
      %v1168 = vsel %vm1138, %v1158, 0.0
      %v1169 = vadd.f32 %v1167, %v1168
      %v1170 = vrot.slane %v1169, 4
      %v1171 = vadd.f32 %v1169, %v1170
      %v1172 = vrot.slane %v1171, 2
      %v1173 = vadd.f32 %v1171, %v1172
      %v1174 = vrot.slane %v1173, 1
      %v1175 = vadd.f32 %v1173, %v1174
      %1176 = vst [vmem:[%s181 + $0x1] sm:$0x1] %v1175
      %p1177 = scmp.lt.s32.totalorder %s15, 1
      %s1178 = scalar_select %p1177, %s15, 1
      %s1179 = smul.addr %s1178, 11
      %s1180 = smul.addr %s1179, 4
      %s1181 = scalar_lea.vmem %s2, %s1180
      %p1182 = scmp.lt.s32.totalorder %s15, 1
      %s1183 = scalar_select %p1182, %s15, 1
      %s1184 = smul.addr %s1183, 2
      %s1185 = scalar_lea.vmem %s3, %s1184
      // Predicated region
      $region29: #{downsample_conv_forward.2} parent=27 // pred_check
        %p1186 = pneg %p80
      $region30: #{downsample_conv_forward.2} parent=27 // pred_check_branch
        %1188 = sbr.rel (%p1186) target = $region32
      $region31: #{downsample_conv_forward.2} parent=27 // pred_region
        _
      $region32: #{downsample_conv_forward.2} parent=27 // pred_fallthru
        _
      // Predicated region
      $region33: #{downsample_conv_forward.2} parent=27 // pred_check
        %p1189 = pneg %p106
      $region34: #{downsample_conv_forward.2} parent=27 // pred_check_branch
        %1191 = sbr.rel (%p1189) target = $region36
      $region35: #{downsample_conv_forward.2} parent=27 // pred_region
        _
      $region36: #{downsample_conv_forward.2} parent=27 // pred_fallthru
        _
    $region28: #{downsample_conv_forward.2} parent=5 // pred_fallthru
      _
    %p1192 = scmp.le.s32.totalorder 2, %s10
    // Predicated region
    $region37: #{downsample_conv_forward.2} parent=5 // pred_check
      %p1193 = pneg %p1192
    $region38: #{downsample_conv_forward.2} parent=5 // pred_check_branch
      %1195 = sbr.rel (%p1193) target = $region40
    $region39: #{downsample_conv_forward.2} parent=5 // pred_region
      %s1196 = ssub.s32 %s10, 2
      // Predicated region
      $region41: #{downsample_conv_forward.2} parent=39 // pred_check
        %p1197 = pneg %p86
      $region42: #{downsample_conv_forward.2} parent=39 // pred_check_branch
        %1199 = sbr.rel (%p1197) target = $region44
      $region43: #{downsample_conv_forward.2} parent=39 // pred_region
        %p1200 = scmp.lt.s32.totalorder %s16, 1
        %s1201 = scalar_select %p1200, %s16, 1
        %s1202 = smul.addr %s1201, 11
        %s1203 = smul.addr %s1202, 4
        %s1204 = scalar_lea.vmem %s2, %s1203
      $region44: #{downsample_conv_forward.2} parent=39 // pred_fallthru
        _
      // Predicated region
      $region45: #{downsample_conv_forward.2} parent=39 // pred_check
        %p1205 = pneg %p112
      $region46: #{downsample_conv_forward.2} parent=39 // pred_check_branch
        %1207 = sbr.rel (%p1205) target = $region48
      $region47: #{downsample_conv_forward.2} parent=39 // pred_region
        %p1208 = scmp.lt.s32.totalorder %s16, 1
        %s1209 = scalar_select %p1208, %s16, 1
        %s1210 = smul.addr %s1209, 2
        %s1211 = scalar_lea.vmem %s3, %s1210
      $region48: #{downsample_conv_forward.2} parent=39 // pred_fallthru
        _
    $region40: #{downsample_conv_forward.2} parent=5 // pred_fallthru
      _
  $region6: #{downsample_conv_forward.2} parent=0 // loop_footer
    %s14 = sadd.s32 1, %s10
  $region7: #{downsample_conv_forward.2} parent=0 // loop_footer_branch
    %9 = sbr.rel target = $region3
  $region8: #{downsample_conv_forward.2} parent=0 // loop_exit
    _

</llo_original>
